<compile_context>
chip_gen: v7x
topology: tpu7x:2x2x1
jax: 0.10.0
libtpu: 0.0.40
codegen_flags: <defaults>
</compile_context>

<pallas_src>
import jax
import jax.numpy as jnp
from jax.experimental import pallas as pl
from jax.experimental.pallas import tpu as pltpu

EMBED_DIM = 500
D_PAD = 512                              # embed dim padded to a lane multiple
CHANNELS = (300, 187, 25, 1)             # conv1..conv4 out_channels
KSIZES = (1, 2, 3, 4)
C1, C2, C3, C4 = CHANNELS
FEAT_DIM = sum(CHANNELS)                 # 513, matches nn.Linear(513, ...)
FEAT_PAD = 640                           # 513 rounded up to a lane multiple
NUM_CLASSES = 2                          # stand-in for len(LABEL.vocab)
OUT_PAD = 128                            # lane-dense logits block
PAD = 2                                  # F.pad(x, (0, 0, 2, 2)) on the time axis
VOCAB = 50
BATCH = 2
SEQ = 8

KMAX = max(KSIZES)                       # 4
T_PAD_TRUE = SEQ + 2 * PAD               # 12 (padded length the PyTorch conv sees)
T_X = 16                                 # per-batch time rows, sublane multiple

# Shift-slab layout of the fused conv weight (feature order k=4,3,2,1 so the
# channels that need shift dt are a prefix of the feature axis):
#   slab dt holds the dt-th weight row of every branch with k > dt.
SLAB_REAL = tuple(sum(c for c, k in zip(CHANNELS, KSIZES) if k > dt)
                  for dt in range(KMAX))                      # (513, 213, 26, 1)
SLAB_W = (640, 256, 128, 128)                                 # 128-aligned widths
SLAB_OFF = (0, 640, 896, 1024)
NCOL = sum(SLAB_W)                                            # 1152


def convo_forward(tokens, params):
    emb, (w1, b1), (w2, b2), (w3, b3), (w4, b4), (fcw, fcb) = params
    B = tokens.shape[0]
    BT = B * T_X
    M_TOT = ((BT + KMAX - 1 + 7) // 8) * 8                    # rows fed to the MXU

    # Per-feature valid-time thresholds (feature order b4, b3, b2, b1).
    TH1 = C4                    # 1
    TH2 = C4 + C3               # 26
    TH3 = C4 + C3 + C2          # 213
    TO = [T_PAD_TRUE - k + 1 for k in (4, 3, 2, 1)]           # 9, 10, 11, 12

    def kernel(x_ref, w_ref, aux_ref, out_ref):
        # x_ref:  (M_TOT, D_PAD)      bf16  zero-padded embeddings, B*T_X valid rows
        # w_ref:  (D_PAD, NCOL)       bf16  shift-slab conv weights
        # aux_ref:(2+NCLS, FEAT_PAD)  f32   [conv bias; fc bias; fc weight rows]
        # out_ref:(B, OUT_PAD)        f32   lane-dense logits (first NCLS lanes real)
        y = jnp.dot(x_ref[...], w_ref[...],
                    preferred_element_type=jnp.float32)        # (M_TOT, NCOL)

        # Per-branch shift-add: o[b,t,f] = sum_dt y[b,t+dt, slab_dt col of f].
        # All lane slice boundaries are multiples of 128; cross-batch / pad rows
        # only reach time positions that are masked below.
        o = y[0:BT, 0:FEAT_PAD]
        for dt in range(1, KMAX):
            add = y[dt:dt + BT, SLAB_OFF[dt]:SLAB_OFF[dt] + SLAB_W[dt]]
            add = jnp.concatenate(
                [add, jnp.zeros((BT, FEAT_PAD - SLAB_W[dt]), jnp.float32)], axis=1)
            o = o + add
        o = o.reshape(B, T_X, FEAT_PAD)

        # Mask time positions outside each branch's valid conv window, max over time.
        t_idx = jax.lax.broadcasted_iota(jnp.int32, o.shape, 1)
        f_idx = jax.lax.broadcasted_iota(jnp.int32, o.shape, 2)
        t_out = jnp.where(f_idx < TH1, TO[0],
                jnp.where(f_idx < TH2, TO[1],
                jnp.where(f_idx < TH3, TO[2], TO[3])))
        feat = jnp.max(jnp.where(t_idx < t_out, o, -jnp.inf), axis=1)  # (B, FEAT_PAD)

        aux = aux_ref[...]
        feat = jnp.maximum(feat + aux[0:1, :], 0.0)            # conv bias + ReLU
        # dropout(p=0.35) is identity at inference (eval mode); intentionally skipped.

        # fc1 (f32, on the VPU) + ReLU, written as one lane-dense (B, 128) block.
        lane = jax.lax.broadcasted_iota(jnp.int32, (B, OUT_PAD), 1)
        logits = aux[1:2, 0:OUT_PAD]                           # fc bias (pad lanes 0)
        for n in range(NUM_CLASSES):
            ln = jnp.sum(feat * aux[2 + n:3 + n, :], axis=1, keepdims=True)  # (B,1)
            logits = logits + jnp.where(lane == n, ln, 0.0)
        out_ref[...] = jnp.maximum(logits, 0.0)

    # --- embedding lookup with F.pad folded into the gather (extra zero row)
    pad_id = emb.shape[0]
    emb_aug = jnp.concatenate([emb, jnp.zeros((1, EMBED_DIM), emb.dtype)], axis=0)
    toks = jnp.pad(tokens, ((0, 0), (PAD, T_X - SEQ - PAD)),
                   constant_values=pad_id)                     # (B, T_X)
    x = emb_aug[toks].reshape(BT, EMBED_DIM)                   # (BT, 500) f32
    x = jnp.pad(x, ((0, M_TOT - BT), (0, D_PAD - EMBED_DIM)))  # (M_TOT, 512)
    x = x.astype(jnp.bfloat16)

    # --- fused conv-weight slab (D_PAD, NCOL): one column per (shift, channel),
    #     branch order k=4,3,2,1; each shift group padded to a 128-lane slab.
    branch_ws = [(w4, 4), (w3, 3), (w2, 2), (w1, 1)]
    slabs = []
    for dt in range(KMAX):
        cols = [w[:, 0, dt, :].T for (w, k) in branch_ws if k > dt]   # (D, C_k) each
        blk = jnp.concatenate(cols, axis=1)
        blk = jnp.pad(blk, ((0, D_PAD - EMBED_DIM), (0, SLAB_W[dt] - blk.shape[1])))
        slabs.append(blk)
    w_slab = jnp.concatenate(slabs, axis=1).astype(jnp.bfloat16)      # (512, 1152)

    # --- aux: row0 conv bias, row1 fc bias (first NCLS lanes), rows 2.. fc weight,
    #     all in the permuted feature order (b4, b3, b2, b1), zero-padded to 640.
    bias_row = jnp.pad(jnp.concatenate([b4, b3, b2, b1]), (0, FEAT_PAD - FEAT_DIM))
    fcb_row = jnp.pad(fcb, (0, FEAT_PAD - NUM_CLASSES))
    o2, o3, o4 = C1, C1 + C2, C1 + C2 + C3
    fcw_perm = jnp.concatenate(
        [fcw[:, o4:o4 + C4], fcw[:, o3:o3 + C3], fcw[:, o2:o2 + C2], fcw[:, 0:C1]],
        axis=1)                                                        # (NCLS, 513)
    fcw_pad = jnp.pad(fcw_perm, ((0, 0), (0, FEAT_PAD - FEAT_DIM)))
    aux = jnp.concatenate([bias_row[None, :], fcb_row[None, :], fcw_pad],
                          axis=0).astype(jnp.float32)                  # (2+NCLS, 640)

    flops = 2 * M_TOT * D_PAD * NCOL + 2 * B * NUM_CLASSES * FEAT_PAD
    bytes_accessed = (x.size * 2 + w_slab.size * 2 + aux.size * 4 + B * OUT_PAD * 4)

    out = pl.pallas_call(
        kernel,
        out_shape=jax.ShapeDtypeStruct((B, OUT_PAD), jnp.float32),
        in_specs=[pl.BlockSpec(memory_space=pltpu.MemorySpace.VMEM)] * 3,
        out_specs=pl.BlockSpec(memory_space=pltpu.MemorySpace.VMEM),
        cost_estimate=pl.CostEstimate(flops=flops, transcendentals=0,
                                      bytes_accessed=bytes_accessed),
    )(x, w_slab, aux)
    return out[:, :NUM_CLASSES]


def reference(tokens, params):
    """Pure-JAX f32 reference mirroring the PyTorch forward (eval mode)."""
    emb, (w1, b1), (w2, b2), (w3, b3), (w4, b4), (fcw, fcb) = params
    x = emb[tokens]
    x = jnp.pad(x, ((0, 0), (PAD, PAD), (0, 0)))
    feats = []
    for w, bias in [(w1, b1), (w2, b2), (w3, b3), (w4, b4)]:
        k = w.shape[2]
        t_out = x.shape[1] - k + 1
        o = sum(jnp.einsum('btd,cd->btc', x[:, dt:dt + t_out, :], w[:, 0, dt, :],
                           precision=jax.lax.Precision.HIGHEST)
                for dt in range(k)) + bias[None, None, :]
        feats.append(jnp.max(jnp.maximum(o, 0.0), axis=1))
    feat = jnp.concatenate(feats, axis=1)                     # (B, 513)
    return jnp.maximum(feat @ fcw.T + fcb[None, :], 0.0)


def make_params(key):
    ks = jax.random.split(key, 12)
    emb = jax.random.normal(ks[0], (VOCAB, EMBED_DIM), jnp.float32) * 0.1

    def conv_p(kw, kb, c, k):
        w = jax.random.normal(kw, (c, 1, k, EMBED_DIM), jnp.float32) * 0.05
        b = jax.random.normal(kb, (c,), jnp.float32) * 0.05
        return w, b

    p1 = conv_p(ks[1], ks[2], C1, 1)
    p2 = conv_p(ks[3], ks[4], C2, 2)
    p3 = conv_p(ks[5], ks[6], C3, 3)
    p4 = conv_p(ks[7], ks[8], C4, 4)
    fcw = jax.random.normal(ks[9], (NUM_CLASSES, FEAT_DIM), jnp.float32) * 0.05
    fcb = jax.random.normal(ks[10], (NUM_CLASSES,), jnp.float32) * 0.05
    return emb, p1, p2, p3, p4, (fcw, fcb)


if __name__ == "__main__":
    key = jax.random.PRNGKey(0)
    params = make_params(key)
    tokens = jax.random.randint(jax.random.fold_in(key, 99), (BATCH, SEQ), 0, VOCAB)

    out = jax.jit(convo_forward)(tokens, params)
    out = jax.block_until_ready(out)

    ref = reference(tokens, params)
    assert out.shape == (BATCH, NUM_CLASSES), out.shape
    # bf16 conv weights/activations vs the f32 HIGHEST-precision reference.
    assert jnp.allclose(out, ref, rtol=1e-2, atol=1e-2), (out, ref)
    print("KERNEL_OK")
</pallas_src>

<mosaic_0001>
module attributes {stable_mosaic.version = 11 : i64} {
  func.func @kernel(%arg0: memref<40x512xbf16, #tpu.memory_space<vmem>>, %arg1: memref<512x1152xbf16, #tpu.memory_space<vmem>>, %arg2: memref<4x640xf32, #tpu.memory_space<vmem>>, %arg3: memref<2x128xf32, #tpu.memory_space<vmem>>) attributes {dimension_semantics = [], scalar_prefetch = 0 : i64, scratch_operands = 0 : i64, tpu.core_type = #tpu.core_type<tc>} {
    %c0 = arith.constant 0 : index
    %c0_0 = arith.constant 0 : index
    %0 = vector.load %arg0[%c0, %c0_0] : memref<40x512xbf16, #tpu.memory_space<vmem>>, vector<40x512xbf16>
    %c0_1 = arith.constant 0 : index
    %c0_2 = arith.constant 0 : index
    %1 = vector.load %arg1[%c0_1, %c0_2] : memref<512x1152xbf16, #tpu.memory_space<vmem>>, vector<512x1152xbf16>
    %cst = arith.constant dense<0.000000e+00> : vector<40x1152xf32>
    %2 = tpu.matmul %0, %1, %cst {dimension_numbers = #tpu.dot_dimension_numbers<[1], [0], [0], [1], [0, 0, 1, 1], [], []>} : vector<40x512xbf16>, vector<512x1152xbf16>, vector<40x1152xf32> -> vector<40x1152xf32>
    %3 = vector.extract_strided_slice %2 {offsets = [0, 0], sizes = [32, 640], strides = [1, 1]} : vector<40x1152xf32> to vector<32x640xf32>
    %4 = vector.extract_strided_slice %2 {offsets = [1, 640], sizes = [32, 256], strides = [1, 1]} : vector<40x1152xf32> to vector<32x256xf32>
    %cst_3 = arith.constant 0.000000e+00 : f32
    %5 = vector.broadcast %cst_3 : f32 to vector<32x384xf32>
    %6 = tpu.concatenate %4, %5 in 1 : vector<32x256xf32>, vector<32x384xf32> -> vector<32x640xf32>
    %7 = arith.addf %3, %6 : vector<32x640xf32>
    %8 = vector.extract_strided_slice %2 {offsets = [2, 896], sizes = [32, 128], strides = [1, 1]} : vector<40x1152xf32> to vector<32x128xf32>
    %cst_4 = arith.constant 0.000000e+00 : f32
    %9 = vector.broadcast %cst_4 : f32 to vector<32x512xf32>
    %10 = tpu.concatenate %8, %9 in 1 : vector<32x128xf32>, vector<32x512xf32> -> vector<32x640xf32>
    %11 = arith.addf %7, %10 : vector<32x640xf32>
    %12 = vector.extract_strided_slice %2 {offsets = [3, 1024], sizes = [32, 128], strides = [1, 1]} : vector<40x1152xf32> to vector<32x128xf32>
    %cst_5 = arith.constant 0.000000e+00 : f32
    %13 = vector.broadcast %cst_5 : f32 to vector<32x512xf32>
    %14 = tpu.concatenate %12, %13 in 1 : vector<32x128xf32>, vector<32x512xf32> -> vector<32x640xf32>
    %15 = arith.addf %11, %14 : vector<32x640xf32>
    %16 = vector.shape_cast %15 : vector<32x640xf32> to vector<2x16x640xf32>
    %17 = tpu.iota {dimensions = array<i32: 1>} : vector<2x16x640xi32>
    %18 = tpu.iota {dimensions = array<i32: 2>} : vector<2x16x640xi32>
    %c1_i32 = arith.constant 1 : i32
    %19 = vector.broadcast %c1_i32 : i32 to vector<2x16x640xi32>
    %20 = arith.cmpi slt, %18, %19 : vector<2x16x640xi32>
    %c26_i32 = arith.constant 26 : i32
    %21 = vector.broadcast %c26_i32 : i32 to vector<2x16x640xi32>
    %22 = arith.cmpi slt, %18, %21 : vector<2x16x640xi32>
    %c213_i32 = arith.constant 213 : i32
    %23 = vector.broadcast %c213_i32 : i32 to vector<2x16x640xi32>
    %24 = arith.cmpi slt, %18, %23 : vector<2x16x640xi32>
    %c11_i32 = arith.constant 11 : i32
    %c12_i32 = arith.constant 12 : i32
    %25 = vector.broadcast %c11_i32 : i32 to vector<2x16x640xi32>
    %26 = vector.broadcast %c12_i32 : i32 to vector<2x16x640xi32>
    %27 = arith.select %24, %25, %26 : vector<2x16x640xi1>, vector<2x16x640xi32>
    %c10_i32 = arith.constant 10 : i32
    %28 = vector.broadcast %c10_i32 : i32 to vector<2x16x640xi32>
    %29 = arith.select %22, %28, %27 : vector<2x16x640xi1>, vector<2x16x640xi32>
    %c9_i32 = arith.constant 9 : i32
    %30 = vector.broadcast %c9_i32 : i32 to vector<2x16x640xi32>
    %31 = arith.select %20, %30, %29 : vector<2x16x640xi1>, vector<2x16x640xi32>
    %32 = arith.cmpi slt, %17, %31 : vector<2x16x640xi32>
    %cst_6 = arith.constant 0xFF800000 : f32
    %33 = vector.broadcast %cst_6 : f32 to vector<2x16x640xf32>
    %34 = arith.select %32, %16, %33 : vector<2x16x640xi1>, vector<2x16x640xf32>
    %cst_7 = arith.constant dense<0xFF800000> : vector<2x640xf32>
    %35 = vector.multi_reduction <maximumf>, %34, %cst_7 [1] : vector<2x16x640xf32> to vector<2x640xf32>
    %c0_8 = arith.constant 0 : index
    %c0_9 = arith.constant 0 : index
    %36 = vector.load %arg2[%c0_8, %c0_9] : memref<4x640xf32, #tpu.memory_space<vmem>>, vector<4x640xf32>
    %37 = vector.extract_strided_slice %36 {offsets = [0, 0], sizes = [1, 640], strides = [1, 1]} : vector<4x640xf32> to vector<1x640xf32>
    %38 = vector.broadcast %37 : vector<1x640xf32> to vector<2x640xf32>
    %39 = arith.addf %35, %38 : vector<2x640xf32>
    %cst_10 = arith.constant 0.000000e+00 : f32
    %40 = vector.broadcast %cst_10 : f32 to vector<2x640xf32>
    %41 = arith.maximumf %39, %40 : vector<2x640xf32>
    %42 = tpu.iota {dimensions = array<i32: 1>} : vector<2x128xi32>
    %43 = vector.extract_strided_slice %36 {offsets = [1, 0], sizes = [1, 128], strides = [1, 1]} : vector<4x640xf32> to vector<1x128xf32>
    %44 = vector.extract_strided_slice %36 {offsets = [2, 0], sizes = [1, 640], strides = [1, 1]} : vector<4x640xf32> to vector<1x640xf32>
    %45 = vector.broadcast %44 : vector<1x640xf32> to vector<2x640xf32>
    %46 = arith.mulf %41, %45 : vector<2x640xf32>
    %cst_11 = arith.constant dense<0.000000e+00> : vector<2xf32>
    %47 = vector.multi_reduction <add>, %46, %cst_11 [1] : vector<2x640xf32> to vector<2xf32>
    %48 = vector.shape_cast %47 : vector<2xf32> to vector<2x1xf32>
    %c0_i32 = arith.constant 0 : i32
    %49 = vector.broadcast %c0_i32 : i32 to vector<2x128xi32>
    %50 = arith.cmpi eq, %42, %49 : vector<2x128xi32>
    %cst_12 = arith.constant 0.000000e+00 : f32
    %51 = vector.shape_cast %48 : vector<2x1xf32> to vector<2x1xf32>
    %52 = vector.broadcast %51 : vector<2x1xf32> to vector<2x128xf32>
    %53 = vector.broadcast %cst_12 : f32 to vector<2x128xf32>
    %54 = arith.select %50, %52, %53 : vector<2x128xi1>, vector<2x128xf32>
    %55 = vector.broadcast %43 : vector<1x128xf32> to vector<2x128xf32>
    %56 = arith.addf %55, %54 : vector<2x128xf32>
    %57 = vector.extract_strided_slice %36 {offsets = [3, 0], sizes = [1, 640], strides = [1, 1]} : vector<4x640xf32> to vector<1x640xf32>
    %58 = vector.broadcast %57 : vector<1x640xf32> to vector<2x640xf32>
    %59 = arith.mulf %41, %58 : vector<2x640xf32>
    %cst_13 = arith.constant dense<0.000000e+00> : vector<2xf32>
    %60 = vector.multi_reduction <add>, %59, %cst_13 [1] : vector<2x640xf32> to vector<2xf32>
    %61 = vector.shape_cast %60 : vector<2xf32> to vector<2x1xf32>
    %c1_i32_14 = arith.constant 1 : i32
    %62 = vector.broadcast %c1_i32_14 : i32 to vector<2x128xi32>
    %63 = arith.cmpi eq, %42, %62 : vector<2x128xi32>
    %cst_15 = arith.constant 0.000000e+00 : f32
    %64 = vector.shape_cast %61 : vector<2x1xf32> to vector<2x1xf32>
    %65 = vector.broadcast %64 : vector<2x1xf32> to vector<2x128xf32>
    %66 = vector.broadcast %cst_15 : f32 to vector<2x128xf32>
    %67 = arith.select %63, %65, %66 : vector<2x128xi1>, vector<2x128xf32>
    %68 = arith.addf %56, %67 : vector<2x128xf32>
    %cst_16 = arith.constant 0.000000e+00 : f32
    %69 = vector.broadcast %cst_16 : f32 to vector<2x128xf32>
    %70 = arith.maximumf %68, %69 : vector<2x128xf32>
    %c0_17 = arith.constant 0 : index
    %c0_18 = arith.constant 0 : index
    %71 = vector.load %arg3[%c0_17, %c0_18] : memref<2x128xf32, #tpu.memory_space<vmem>>, vector<2x128xf32>
    tpu.vector_store %arg3[%c0_17, %c0_18], %70 {strides = array<i32>} : memref<2x128xf32, #tpu.memory_space<vmem>>, vector<2x128xf32>,
    return
  }
}

</mosaic_0001>

<llo_original>
// kernel: convo_forward.1
$region0: #{convo_forward.1}
  #allocation0 [shape = 'u32[]', space=smem, size = 0x4, offset = 0x4, fixed_abs, tag = 'smem constant byte address 0x4 - core index']
  #allocation1 [shape = 'u32[144,128]{1,0:T(1,128)}', space=vmem, size = 0x12000, scoped, tag = 'internal scratch']
  %s0 = inlined_call_operand.vmem [shape: bf16[40,512], index: 0, kind: input, shape index: {}]
  %s1 = inlined_call_operand.vmem [shape: bf16[512,1152], index: 1, kind: input, shape index: {}]
  %s2 = inlined_call_operand.vmem [shape: f32[4,640], index: 2, kind: input, shape index: {}]
  %s3 = inlined_call_operand.hbm [shape: f32[2,128], index: 3, kind: output, shape index: {}]
  %s4 = sld [smem:[#allocation0]]
  $region22: #{convo_forward.1} parent=0
    _
  %s6 = ssub.s32 1, %s4
  %s7 = scalar_select 0, %s6, %s4
  $region1: #{convo_forward.1} parent=0
    #allocation2 [shape = 'u8[1024]{0}', space=vmem, size = 0x400, scoped, tag = 'output window, operand 0, single buffered']
    #allocation3 [shape = 's32[1]{0}', space=sflag, size = 0x4, scoped, tag = 'scoped memory for convo_forward.1']
    %8 = vsyncpa [#allocation3], 0
    // Predicated region
    $region2: #{convo_forward.1} parent=1 // pred_check
      _
    $region3: #{convo_forward.1} parent=1 // pred_check_branch
      %10 = sbr.rel (0) target = $region5
    $region4: #{convo_forward.1} parent=1 // pred_region
      _
    $region5: #{convo_forward.1} parent=1 // pred_fallthru
      _
    // Predicated region
    $region6: #{convo_forward.1} parent=1 // pred_check
      _
    $region7: #{convo_forward.1} parent=1 // pred_check_branch
      %12 = sbr.rel (0) target = $region9
    $region8: #{convo_forward.1} parent=1 // pred_region
      _
    $region9: #{convo_forward.1} parent=1 // pred_fallthru
      _
    // Predicated region
    $region10: #{convo_forward.1} parent=1 // pred_check
      _
    $region11: #{convo_forward.1} parent=1 // pred_check_branch
      %14 = sbr.rel (0) target = $region13
    $region12: #{convo_forward.1} parent=1 // pred_region
      _
    $region13: #{convo_forward.1} parent=1 // pred_fallthru
      _
    %v16 = vld [vmem:[%s0] sm:$0xff]
    %v17 = vld [vmem:[%s0 + $0x8] sm:$0xff]
    %v18 = vld [vmem:[%s0 + $0x10] sm:$0xff]
    %v19 = vld [vmem:[%s0 + $0x18] sm:$0xff]
    %v20 = vld [vmem:[%s0 + $0x20] sm:$0xff]
    %v21 = vld [vmem:[%s0 + $0x28] sm:$0xff]
    %v22 = vld [vmem:[%s0 + $0x30] sm:$0xff]
    %v23 = vld [vmem:[%s0 + $0x38] sm:$0xff]
    %v24 = vld [vmem:[%s0 + $0x40] sm:$0xff]
    %v25 = vld [vmem:[%s0 + $0x48] sm:$0xff]
    %v26 = vld [vmem:[%s1] sm:$0xff]
    %v27 = vld [vmem:[%s1 + $0x8] sm:$0xff]
    %v28 = vld [vmem:[%s1 + $0x10] sm:$0xff]
    %v29 = vld [vmem:[%s1 + $0x18] sm:$0xff]
    %v30 = vld [vmem:[%s1 + $0x20] sm:$0xf]
    %v31 = vld [vmem:[%s1 + $0x24] sm:$0xff]
    %v32 = vld [vmem:[%s1 + $0x2c] sm:$0xff]
    %v33 = vld [vmem:[%s1 + $0x34] sm:$0xff]
    %v34 = vld [vmem:[%s1 + $0x3c] sm:$0xff]
    %v35 = vld [vmem:[%s1 + $0x44] sm:$0xf]
    %v36 = vld [vmem:[%s1 + $0x48] sm:$0xff]
    %v37 = vld [vmem:[%s1 + $0x50] sm:$0xff]
    %v38 = vld [vmem:[%s1 + $0x58] sm:$0xff]
    %v39 = vld [vmem:[%s1 + $0x60] sm:$0xff]
    %v40 = vld [vmem:[%s1 + $0x68] sm:$0xf]
    %v41 = vld [vmem:[%s1 + $0x6c] sm:$0xff]
    %v42 = vld [vmem:[%s1 + $0x74] sm:$0xff]
    %v43 = vld [vmem:[%s1 + $0x7c] sm:$0xff]
    %v44 = vld [vmem:[%s1 + $0x84] sm:$0xff]
    %v45 = vld [vmem:[%s1 + $0x8c] sm:$0xf]
    %v46 = vld [vmem:[%s1 + $0x90] sm:$0xff]
    %v47 = vld [vmem:[%s1 + $0x98] sm:$0xff]
    %v48 = vld [vmem:[%s1 + $0xa0] sm:$0xff]
    %v49 = vld [vmem:[%s1 + $0xa8] sm:$0xff]
    %v50 = vld [vmem:[%s1 + $0xb0] sm:$0xf]
    %v51 = vld [vmem:[%s1 + $0xb4] sm:$0xff]
    %v52 = vld [vmem:[%s1 + $0xbc] sm:$0xff]
    %v53 = vld [vmem:[%s1 + $0xc4] sm:$0xff]
    %v54 = vld [vmem:[%s1 + $0xcc] sm:$0xff]
    %v55 = vld [vmem:[%s1 + $0xd4] sm:$0xf]
    %v56 = vld [vmem:[%s1 + $0xd8] sm:$0xff]
    %v57 = vld [vmem:[%s1 + $0xe0] sm:$0xff]
    %v58 = vld [vmem:[%s1 + $0xe8] sm:$0xff]
    %v59 = vld [vmem:[%s1 + $0xf0] sm:$0xff]
    %v60 = vld [vmem:[%s1 + $0xf8] sm:$0xf]
    %v61 = vld [vmem:[%s1 + $0xfc] sm:$0xff]
    %v62 = vld [vmem:[%s1 + $0x104] sm:$0xff]
    %v63 = vld [vmem:[%s1 + $0x10c] sm:$0xff]
    %v64 = vld [vmem:[%s1 + $0x114] sm:$0xff]
    %v65 = vld [vmem:[%s1 + $0x11c] sm:$0xf]
    %v66 = vld [vmem:[%s1 + $0x120] sm:$0xff]
    %v67 = vld [vmem:[%s1 + $0x128] sm:$0xff]
    %v68 = vld [vmem:[%s1 + $0x130] sm:$0xff]
    %v69 = vld [vmem:[%s1 + $0x138] sm:$0xff]
    %v70 = vld [vmem:[%s1 + $0x140] sm:$0xf]
    %v71 = vld [vmem:[%s1 + $0x144] sm:$0xff]
    %v72 = vld [vmem:[%s1 + $0x14c] sm:$0xff]
    %v73 = vld [vmem:[%s1 + $0x154] sm:$0xff]
    %v74 = vld [vmem:[%s1 + $0x15c] sm:$0xff]
    %v75 = vld [vmem:[%s1 + $0x164] sm:$0xf]
    %v76 = vld [vmem:[%s1 + $0x168] sm:$0xff]
    %v77 = vld [vmem:[%s1 + $0x170] sm:$0xff]
    %v78 = vld [vmem:[%s1 + $0x178] sm:$0xff]
    %v79 = vld [vmem:[%s1 + $0x180] sm:$0xff]
    %v80 = vld [vmem:[%s1 + $0x188] sm:$0xf]
    %v81 = vld [vmem:[%s1 + $0x18c] sm:$0xff]
    %v82 = vld [vmem:[%s1 + $0x194] sm:$0xff]
    %v83 = vld [vmem:[%s1 + $0x19c] sm:$0xff]
    %v84 = vld [vmem:[%s1 + $0x1a4] sm:$0xff]
    %v85 = vld [vmem:[%s1 + $0x1ac] sm:$0xf]
    %v86 = vld [vmem:[%s1 + $0x1b0] sm:$0xff]
    %v87 = vld [vmem:[%s1 + $0x1b8] sm:$0xff]
    %v88 = vld [vmem:[%s1 + $0x1c0] sm:$0xff]
    %v89 = vld [vmem:[%s1 + $0x1c8] sm:$0xff]
    %v90 = vld [vmem:[%s1 + $0x1d0] sm:$0xf]
    %v91 = vld [vmem:[%s1 + $0x1d4] sm:$0xff]
    %v92 = vld [vmem:[%s1 + $0x1dc] sm:$0xff]
    %v93 = vld [vmem:[%s1 + $0x1e4] sm:$0xff]
    %v94 = vld [vmem:[%s1 + $0x1ec] sm:$0xff]
    %v95 = vld [vmem:[%s1 + $0x1f4] sm:$0xf]
    %v96 = vld [vmem:[%s1 + $0x1f8] sm:$0xff]
    %v97 = vld [vmem:[%s1 + $0x200] sm:$0xff]
    %v98 = vld [vmem:[%s1 + $0x208] sm:$0xff]
    %v99 = vld [vmem:[%s1 + $0x210] sm:$0xff]
    %v100 = vld [vmem:[%s1 + $0x218] sm:$0xf]
    %v101 = vld [vmem:[%s1 + $0x21c] sm:$0xff]
    %v102 = vld [vmem:[%s1 + $0x224] sm:$0xff]
    %v103 = vld [vmem:[%s1 + $0x22c] sm:$0xff]
    %v104 = vld [vmem:[%s1 + $0x234] sm:$0xff]
    %v105 = vld [vmem:[%s1 + $0x23c] sm:$0xf]
    %v106 = vld [vmem:[%s1 + $0x240] sm:$0xff]
    %v107 = vld [vmem:[%s1 + $0x248] sm:$0xff]
    %v108 = vld [vmem:[%s1 + $0x250] sm:$0xff]
    %v109 = vld [vmem:[%s1 + $0x258] sm:$0xff]
    %v110 = vld [vmem:[%s1 + $0x260] sm:$0xf]
    %v111 = vld [vmem:[%s1 + $0x264] sm:$0xff]
    %v112 = vld [vmem:[%s1 + $0x26c] sm:$0xff]
    %v113 = vld [vmem:[%s1 + $0x274] sm:$0xff]
    %v114 = vld [vmem:[%s1 + $0x27c] sm:$0xff]
    %v115 = vld [vmem:[%s1 + $0x284] sm:$0xf]
    %v116 = vld [vmem:[%s1 + $0x288] sm:$0xff]
    %v117 = vld [vmem:[%s1 + $0x290] sm:$0xff]
    %v118 = vld [vmem:[%s1 + $0x298] sm:$0xff]
    %v119 = vld [vmem:[%s1 + $0x2a0] sm:$0xff]
    %v120 = vld [vmem:[%s1 + $0x2a8] sm:$0xf]
    %v121 = vld [vmem:[%s1 + $0x2ac] sm:$0xff]
    %v122 = vld [vmem:[%s1 + $0x2b4] sm:$0xff]
    %v123 = vld [vmem:[%s1 + $0x2bc] sm:$0xff]
    %v124 = vld [vmem:[%s1 + $0x2c4] sm:$0xff]
    %v125 = vld [vmem:[%s1 + $0x2cc] sm:$0xf]
    %v126 = vld [vmem:[%s1 + $0x2d0] sm:$0xff]
    %v127 = vld [vmem:[%s1 + $0x2d8] sm:$0xff]
    %v128 = vld [vmem:[%s1 + $0x2e0] sm:$0xff]
    %v129 = vld [vmem:[%s1 + $0x2e8] sm:$0xff]
    %v130 = vld [vmem:[%s1 + $0x2f0] sm:$0xf]
    %v131 = vld [vmem:[%s1 + $0x2f4] sm:$0xff]
    %v132 = vld [vmem:[%s1 + $0x2fc] sm:$0xff]
    %v133 = vld [vmem:[%s1 + $0x304] sm:$0xff]
    %v134 = vld [vmem:[%s1 + $0x30c] sm:$0xff]
    %v135 = vld [vmem:[%s1 + $0x314] sm:$0xf]
    %v136 = vld [vmem:[%s1 + $0x318] sm:$0xff]
    %v137 = vld [vmem:[%s1 + $0x320] sm:$0xff]
    %v138 = vld [vmem:[%s1 + $0x328] sm:$0xff]
    %v139 = vld [vmem:[%s1 + $0x330] sm:$0xff]
    %v140 = vld [vmem:[%s1 + $0x338] sm:$0xf]
    %v141 = vld [vmem:[%s1 + $0x33c] sm:$0xff]
    %v142 = vld [vmem:[%s1 + $0x344] sm:$0xff]
    %v143 = vld [vmem:[%s1 + $0x34c] sm:$0xff]
    %v144 = vld [vmem:[%s1 + $0x354] sm:$0xff]
    %v145 = vld [vmem:[%s1 + $0x35c] sm:$0xf]
    %v146 = vld [vmem:[%s1 + $0x360] sm:$0xff]
    %v147 = vld [vmem:[%s1 + $0x368] sm:$0xff]
    %v148 = vld [vmem:[%s1 + $0x370] sm:$0xff]
    %v149 = vld [vmem:[%s1 + $0x378] sm:$0xff]
    %v150 = vld [vmem:[%s1 + $0x380] sm:$0xf]
    %v151 = vld [vmem:[%s1 + $0x384] sm:$0xff]
    %v152 = vld [vmem:[%s1 + $0x38c] sm:$0xff]
    %v153 = vld [vmem:[%s1 + $0x394] sm:$0xff]
    %v154 = vld [vmem:[%s1 + $0x39c] sm:$0xff]
    %v155 = vld [vmem:[%s1 + $0x3a4] sm:$0xf]
    %v156 = vld [vmem:[%s1 + $0x3a8] sm:$0xff]
    %v157 = vld [vmem:[%s1 + $0x3b0] sm:$0xff]
    %v158 = vld [vmem:[%s1 + $0x3b8] sm:$0xff]
    %v159 = vld [vmem:[%s1 + $0x3c0] sm:$0xff]
    %v160 = vld [vmem:[%s1 + $0x3c8] sm:$0xf]
    %v161 = vld [vmem:[%s1 + $0x3cc] sm:$0xff]
    %v162 = vld [vmem:[%s1 + $0x3d4] sm:$0xff]
    %v163 = vld [vmem:[%s1 + $0x3dc] sm:$0xff]
    %v164 = vld [vmem:[%s1 + $0x3e4] sm:$0xff]
    %v165 = vld [vmem:[%s1 + $0x3ec] sm:$0xf]
    %v166 = vld [vmem:[%s1 + $0x3f0] sm:$0xff]
    %v167 = vld [vmem:[%s1 + $0x3f8] sm:$0xff]
    %v168 = vld [vmem:[%s1 + $0x400] sm:$0xff]
    %v169 = vld [vmem:[%s1 + $0x408] sm:$0xff]
    %v170 = vld [vmem:[%s1 + $0x410] sm:$0xf]
    %v171 = vld [vmem:[%s1 + $0x414] sm:$0xff]
    %v172 = vld [vmem:[%s1 + $0x41c] sm:$0xff]
    %v173 = vld [vmem:[%s1 + $0x424] sm:$0xff]
    %v174 = vld [vmem:[%s1 + $0x42c] sm:$0xff]
    %v175 = vld [vmem:[%s1 + $0x434] sm:$0xf]
    %v176 = vld [vmem:[%s1 + $0x438] sm:$0xff]
    %v177 = vld [vmem:[%s1 + $0x440] sm:$0xff]
    %v178 = vld [vmem:[%s1 + $0x448] sm:$0xff]
    %v179 = vld [vmem:[%s1 + $0x450] sm:$0xff]
    %v180 = vld [vmem:[%s1 + $0x458] sm:$0xf]
    %v181 = vld [vmem:[%s1 + $0x45c] sm:$0xff]
    %v182 = vld [vmem:[%s1 + $0x464] sm:$0xff]
    %v183 = vld [vmem:[%s1 + $0x46c] sm:$0xff]
    %v184 = vld [vmem:[%s1 + $0x474] sm:$0xff]
    %v185 = vld [vmem:[%s1 + $0x47c] sm:$0xf]
    %v186 = vld [vmem:[%s1 + $0x480] sm:$0xff]
    %v187 = vld [vmem:[%s1 + $0x488] sm:$0xff]
    %v188 = vld [vmem:[%s1 + $0x490] sm:$0xff]
    %v189 = vld [vmem:[%s1 + $0x498] sm:$0xff]
    %v190 = vld [vmem:[%s1 + $0x4a0] sm:$0xf]
    %v191 = vld [vmem:[%s1 + $0x4a4] sm:$0xff]
    %v192 = vld [vmem:[%s1 + $0x4ac] sm:$0xff]
    %v193 = vld [vmem:[%s1 + $0x4b4] sm:$0xff]
    %v194 = vld [vmem:[%s1 + $0x4bc] sm:$0xff]
    %v195 = vld [vmem:[%s1 + $0x4c4] sm:$0xf]
    %v196 = vld [vmem:[%s1 + $0x4c8] sm:$0xff]
    %v197 = vld [vmem:[%s1 + $0x4d0] sm:$0xff]
    %v198 = vld [vmem:[%s1 + $0x4d8] sm:$0xff]
    %v199 = vld [vmem:[%s1 + $0x4e0] sm:$0xff]
    %v200 = vld [vmem:[%s1 + $0x4e8] sm:$0xf]
    %v201 = vld [vmem:[%s1 + $0x4ec] sm:$0xff]
    %v202 = vld [vmem:[%s1 + $0x4f4] sm:$0xff]
    %v203 = vld [vmem:[%s1 + $0x4fc] sm:$0xff]
    %v204 = vld [vmem:[%s1 + $0x504] sm:$0xff]
    %v205 = vld [vmem:[%s1 + $0x50c] sm:$0xf]
    %v206 = vld [vmem:[%s1 + $0x510] sm:$0xff]
    %v207 = vld [vmem:[%s1 + $0x518] sm:$0xff]
    %v208 = vld [vmem:[%s1 + $0x520] sm:$0xff]
    %v209 = vld [vmem:[%s1 + $0x528] sm:$0xff]
    %v210 = vld [vmem:[%s1 + $0x530] sm:$0xf]
    %v211 = vld [vmem:[%s1 + $0x534] sm:$0xff]
    %v212 = vld [vmem:[%s1 + $0x53c] sm:$0xff]
    %v213 = vld [vmem:[%s1 + $0x544] sm:$0xff]
    %v214 = vld [vmem:[%s1 + $0x54c] sm:$0xff]
    %v215 = vld [vmem:[%s1 + $0x554] sm:$0xf]
    %v216 = vld [vmem:[%s1 + $0x558] sm:$0xff]
    %v217 = vld [vmem:[%s1 + $0x560] sm:$0xff]
    %v218 = vld [vmem:[%s1 + $0x568] sm:$0xff]
    %v219 = vld [vmem:[%s1 + $0x570] sm:$0xff]
    %v220 = vld [vmem:[%s1 + $0x578] sm:$0xf]
    %v221 = vld [vmem:[%s1 + $0x57c] sm:$0xff]
    %v222 = vld [vmem:[%s1 + $0x584] sm:$0xff]
    %v223 = vld [vmem:[%s1 + $0x58c] sm:$0xff]
    %v224 = vld [vmem:[%s1 + $0x594] sm:$0xff]
    %v225 = vld [vmem:[%s1 + $0x59c] sm:$0xf]
    %v226 = vld [vmem:[%s1 + $0x5a0] sm:$0xff]
    %v227 = vld [vmem:[%s1 + $0x5a8] sm:$0xff]
    %v228 = vld [vmem:[%s1 + $0x5b0] sm:$0xff]
    %v229 = vld [vmem:[%s1 + $0x5b8] sm:$0xff]
    %v230 = vld [vmem:[%s1 + $0x5c0] sm:$0xf]
    %v231 = vld [vmem:[%s1 + $0x5c4] sm:$0xff]
    %v232 = vld [vmem:[%s1 + $0x5cc] sm:$0xff]
    %v233 = vld [vmem:[%s1 + $0x5d4] sm:$0xff]
    %v234 = vld [vmem:[%s1 + $0x5dc] sm:$0xff]
    %v235 = vld [vmem:[%s1 + $0x5e4] sm:$0xf]
    %v236 = vld [vmem:[%s1 + $0x5e8] sm:$0xff]
    %v237 = vld [vmem:[%s1 + $0x5f0] sm:$0xff]
    %v238 = vld [vmem:[%s1 + $0x5f8] sm:$0xff]
    %v239 = vld [vmem:[%s1 + $0x600] sm:$0xff]
    %v240 = vld [vmem:[%s1 + $0x608] sm:$0xf]
    %v241 = vld [vmem:[%s1 + $0x60c] sm:$0xff]
    %v242 = vld [vmem:[%s1 + $0x614] sm:$0xff]
    %v243 = vld [vmem:[%s1 + $0x61c] sm:$0xff]
    %v244 = vld [vmem:[%s1 + $0x624] sm:$0xff]
    %v245 = vld [vmem:[%s1 + $0x62c] sm:$0xf]
    %v246 = vld [vmem:[%s1 + $0x630] sm:$0xff]
    %v247 = vld [vmem:[%s1 + $0x638] sm:$0xff]
    %v248 = vld [vmem:[%s1 + $0x640] sm:$0xff]
    %v249 = vld [vmem:[%s1 + $0x648] sm:$0xff]
    %v250 = vld [vmem:[%s1 + $0x650] sm:$0xf]
    %v251 = vld [vmem:[%s1 + $0x654] sm:$0xff]
    %v252 = vld [vmem:[%s1 + $0x65c] sm:$0xff]
    %v253 = vld [vmem:[%s1 + $0x664] sm:$0xff]
    %v254 = vld [vmem:[%s1 + $0x66c] sm:$0xff]
    %v255 = vld [vmem:[%s1 + $0x674] sm:$0xf]
    %v256 = vld [vmem:[%s1 + $0x678] sm:$0xff]
    %v257 = vld [vmem:[%s1 + $0x680] sm:$0xff]
    %v258 = vld [vmem:[%s1 + $0x688] sm:$0xff]
    %v259 = vld [vmem:[%s1 + $0x690] sm:$0xff]
    %v260 = vld [vmem:[%s1 + $0x698] sm:$0xf]
    %v261 = vld [vmem:[%s1 + $0x69c] sm:$0xff]
    %v262 = vld [vmem:[%s1 + $0x6a4] sm:$0xff]
    %v263 = vld [vmem:[%s1 + $0x6ac] sm:$0xff]
    %v264 = vld [vmem:[%s1 + $0x6b4] sm:$0xff]
    %v265 = vld [vmem:[%s1 + $0x6bc] sm:$0xf]
    %v266 = vld [vmem:[%s1 + $0x6c0] sm:$0xff]
    %v267 = vld [vmem:[%s1 + $0x6c8] sm:$0xff]
    %v268 = vld [vmem:[%s1 + $0x6d0] sm:$0xff]
    %v269 = vld [vmem:[%s1 + $0x6d8] sm:$0xff]
    %v270 = vld [vmem:[%s1 + $0x6e0] sm:$0xf]
    %v271 = vld [vmem:[%s1 + $0x6e4] sm:$0xff]
    %v272 = vld [vmem:[%s1 + $0x6ec] sm:$0xff]
    %v273 = vld [vmem:[%s1 + $0x6f4] sm:$0xff]
    %v274 = vld [vmem:[%s1 + $0x6fc] sm:$0xff]
    %v275 = vld [vmem:[%s1 + $0x704] sm:$0xf]
    %v276 = vld [vmem:[%s1 + $0x708] sm:$0xff]
    %v277 = vld [vmem:[%s1 + $0x710] sm:$0xff]
    %v278 = vld [vmem:[%s1 + $0x718] sm:$0xff]
    %v279 = vld [vmem:[%s1 + $0x720] sm:$0xff]
    %v280 = vld [vmem:[%s1 + $0x728] sm:$0xf]
    %v281 = vld [vmem:[%s1 + $0x72c] sm:$0xff]
    %v282 = vld [vmem:[%s1 + $0x734] sm:$0xff]
    %v283 = vld [vmem:[%s1 + $0x73c] sm:$0xff]
    %v284 = vld [vmem:[%s1 + $0x744] sm:$0xff]
    %v285 = vld [vmem:[%s1 + $0x74c] sm:$0xf]
    %v286 = vld [vmem:[%s1 + $0x750] sm:$0xff]
    %v287 = vld [vmem:[%s1 + $0x758] sm:$0xff]
    %v288 = vld [vmem:[%s1 + $0x760] sm:$0xff]
    %v289 = vld [vmem:[%s1 + $0x768] sm:$0xff]
    %v290 = vld [vmem:[%s1 + $0x770] sm:$0xf]
    %v291 = vld [vmem:[%s1 + $0x774] sm:$0xff]
    %v292 = vld [vmem:[%s1 + $0x77c] sm:$0xff]
    %v293 = vld [vmem:[%s1 + $0x784] sm:$0xff]
    %v294 = vld [vmem:[%s1 + $0x78c] sm:$0xff]
    %v295 = vld [vmem:[%s1 + $0x794] sm:$0xf]
    %v296 = vld [vmem:[%s1 + $0x798] sm:$0xff]
    %v297 = vld [vmem:[%s1 + $0x7a0] sm:$0xff]
    %v298 = vld [vmem:[%s1 + $0x7a8] sm:$0xff]
    %v299 = vld [vmem:[%s1 + $0x7b0] sm:$0xff]
    %v300 = vld [vmem:[%s1 + $0x7b8] sm:$0xf]
    %v301 = vld [vmem:[%s1 + $0x7bc] sm:$0xff]
    %v302 = vld [vmem:[%s1 + $0x7c4] sm:$0xff]
    %v303 = vld [vmem:[%s1 + $0x7cc] sm:$0xff]
    %v304 = vld [vmem:[%s1 + $0x7d4] sm:$0xff]
    %v305 = vld [vmem:[%s1 + $0x7dc] sm:$0xf]
    %v306 = vld [vmem:[%s1 + $0x7e0] sm:$0xff]
    %v307 = vld [vmem:[%s1 + $0x7e8] sm:$0xff]
    %v308 = vld [vmem:[%s1 + $0x7f0] sm:$0xff]
    %v309 = vld [vmem:[%s1 + $0x7f8] sm:$0xff]
    %v310 = vld [vmem:[%s1 + $0x800] sm:$0xf]
    %v311 = vld [vmem:[%s1 + $0x804] sm:$0xff]
    %v312 = vld [vmem:[%s1 + $0x80c] sm:$0xff]
    %v313 = vld [vmem:[%s1 + $0x814] sm:$0xff]
    %v314 = vld [vmem:[%s1 + $0x81c] sm:$0xff]
    %v315 = vld [vmem:[%s1 + $0x824] sm:$0xf]
    %v316 = vld [vmem:[%s1 + $0x828] sm:$0xff]
    %v317 = vld [vmem:[%s1 + $0x830] sm:$0xff]
    %v318 = vld [vmem:[%s1 + $0x838] sm:$0xff]
    %v319 = vld [vmem:[%s1 + $0x840] sm:$0xff]
    %v320 = vld [vmem:[%s1 + $0x848] sm:$0xf]
    %v321 = vld [vmem:[%s1 + $0x84c] sm:$0xff]
    %v322 = vld [vmem:[%s1 + $0x854] sm:$0xff]
    %v323 = vld [vmem:[%s1 + $0x85c] sm:$0xff]
    %v324 = vld [vmem:[%s1 + $0x864] sm:$0xff]
    %v325 = vld [vmem:[%s1 + $0x86c] sm:$0xf]
    %v326 = vld [vmem:[%s1 + $0x870] sm:$0xff]
    %v327 = vld [vmem:[%s1 + $0x878] sm:$0xff]
    %v328 = vld [vmem:[%s1 + $0x880] sm:$0xff]
    %v329 = vld [vmem:[%s1 + $0x888] sm:$0xff]
    %v330 = vld [vmem:[%s1 + $0x890] sm:$0xf]
    %v331 = vld [vmem:[%s1 + $0x894] sm:$0xff]
    %v332 = vld [vmem:[%s1 + $0x89c] sm:$0xff]
    %v333 = vld [vmem:[%s1 + $0x8a4] sm:$0xff]
    %v334 = vld [vmem:[%s1 + $0x8ac] sm:$0xff]
    %v335 = vld [vmem:[%s1 + $0x8b4] sm:$0xf]
    %v336 = vld [vmem:[%s1 + $0x8b8] sm:$0xff]
    %v337 = vld [vmem:[%s1 + $0x8c0] sm:$0xff]
    %v338 = vld [vmem:[%s1 + $0x8c8] sm:$0xff]
    %v339 = vld [vmem:[%s1 + $0x8d0] sm:$0xff]
    %v340 = vld [vmem:[%s1 + $0x8d8] sm:$0xf]
    %v341 = vld [vmem:[%s1 + $0x8dc] sm:$0xff]
    %v342 = vld [vmem:[%s1 + $0x8e4] sm:$0xff]
    %v343 = vld [vmem:[%s1 + $0x8ec] sm:$0xff]
    %v344 = vld [vmem:[%s1 + $0x8f4] sm:$0xff]
    %v345 = vld [vmem:[%s1 + $0x8fc] sm:$0xf]
    %v356 = vunpack.c.l.b16 %v16
    %v357 = vunpack.c.h.b16 %v16
    %v358 = vunpack.c.l.b16 %v17
    %v359 = vunpack.c.h.b16 %v17
    %v360 = vunpack.c.l.b16 %v18
    %v361 = vunpack.c.h.b16 %v18
    %v362 = vunpack.c.l.b16 %v19
    %v363 = vunpack.c.h.b16 %v19
    %v364 = vunpack.c.l.b16 %v20
    %v365 = vunpack.c.h.b16 %v20
    %v366 = vunpack.c.l.b16 %v21
    %v367 = vunpack.c.h.b16 %v21
    %v368 = vunpack.c.l.b16 %v22
    %v369 = vunpack.c.h.b16 %v22
    %v370 = vunpack.c.l.b16 %v23
    %v371 = vunpack.c.h.b16 %v23
    %v372 = vunpack.c.l.b16 %v24
    %v373 = vunpack.c.h.b16 %v24
    %v374 = vunpack.c.l.b16 %v25
    %v375 = vunpack.c.h.b16 %v25
    %v376 = vpack.c.b16 %v360, %v356
    %v377 = vpack.c.b16 %v361, %v357
    %v378 = vpack.c.b16 %v362, %v358
    %v379 = vpack.c.b16 %v363, %v359
    %v380 = vpack.c.b16 %v368, %v364
    %v381 = vpack.c.b16 %v369, %v365
    %v382 = vpack.c.b16 %v370, %v366
    %v383 = vpack.c.b16 %v371, %v367
    %v384 = vpack.c.b16 %v372, %v372
    %v385 = vpack.c.b16 %v373, %v373
    %v386 = vpack.c.b16 %v374, %v374
    %v387 = vpack.c.b16 %v375, %v375
    %v720 = vunpack.c.l.b16 %v26
    %v721 = vunpack.c.h.b16 %v26
    %v722 = vunpack.c.l.b16 %v27
    %v723 = vunpack.c.h.b16 %v27
    %v724 = vunpack.c.l.b16 %v28
    %v725 = vunpack.c.h.b16 %v28
    %v726 = vunpack.c.l.b16 %v29
    %v727 = vunpack.c.h.b16 %v29
    %v728 = vunpack.c.l.b16 %v30
    %v729 = vunpack.c.l.b16 %v31
    %v730 = vunpack.c.h.b16 %v31
    %v731 = vunpack.c.l.b16 %v32
    %v732 = vunpack.c.h.b16 %v32
    %v733 = vunpack.c.l.b16 %v33
    %v734 = vunpack.c.h.b16 %v33
    %v735 = vunpack.c.l.b16 %v34
    %v736 = vunpack.c.h.b16 %v34
    %v737 = vunpack.c.l.b16 %v35
    %v738 = vunpack.c.l.b16 %v36
    %v739 = vunpack.c.h.b16 %v36
    %v740 = vunpack.c.l.b16 %v37
    %v741 = vunpack.c.h.b16 %v37
    %v742 = vunpack.c.l.b16 %v38
    %v743 = vunpack.c.h.b16 %v38
    %v744 = vunpack.c.l.b16 %v39
    %v745 = vunpack.c.h.b16 %v39
    %v746 = vunpack.c.l.b16 %v40
    %v747 = vunpack.c.l.b16 %v41
    %v748 = vunpack.c.h.b16 %v41
    %v749 = vunpack.c.l.b16 %v42
    %v750 = vunpack.c.h.b16 %v42
    %v751 = vunpack.c.l.b16 %v43
    %v752 = vunpack.c.h.b16 %v43
    %v753 = vunpack.c.l.b16 %v44
    %v754 = vunpack.c.h.b16 %v44
    %v755 = vunpack.c.l.b16 %v45
    %v756 = vunpack.c.l.b16 %v46
    %v757 = vunpack.c.h.b16 %v46
    %v758 = vunpack.c.l.b16 %v47
    %v759 = vunpack.c.h.b16 %v47
    %v760 = vunpack.c.l.b16 %v48
    %v761 = vunpack.c.h.b16 %v48
    %v762 = vunpack.c.l.b16 %v49
    %v763 = vunpack.c.h.b16 %v49
    %v764 = vunpack.c.l.b16 %v50
    %v765 = vunpack.c.l.b16 %v51
    %v766 = vunpack.c.h.b16 %v51
    %v767 = vunpack.c.l.b16 %v52
    %v768 = vunpack.c.h.b16 %v52
    %v769 = vunpack.c.l.b16 %v53
    %v770 = vunpack.c.h.b16 %v53
    %v771 = vunpack.c.l.b16 %v54
    %v772 = vunpack.c.h.b16 %v54
    %v773 = vunpack.c.l.b16 %v55
    %v774 = vunpack.c.l.b16 %v56
    %v775 = vunpack.c.h.b16 %v56
    %v776 = vunpack.c.l.b16 %v57
    %v777 = vunpack.c.h.b16 %v57
    %v778 = vunpack.c.l.b16 %v58
    %v779 = vunpack.c.h.b16 %v58
    %v780 = vunpack.c.l.b16 %v59
    %v781 = vunpack.c.h.b16 %v59
    %v782 = vunpack.c.l.b16 %v60
    %v783 = vunpack.c.l.b16 %v61
    %v784 = vunpack.c.h.b16 %v61
    %v785 = vunpack.c.l.b16 %v62
    %v786 = vunpack.c.h.b16 %v62
    %v787 = vunpack.c.l.b16 %v63
    %v788 = vunpack.c.h.b16 %v63
    %v789 = vunpack.c.l.b16 %v64
    %v790 = vunpack.c.h.b16 %v64
    %v791 = vunpack.c.l.b16 %v65
    %v792 = vunpack.c.l.b16 %v66
    %v793 = vunpack.c.h.b16 %v66
    %v794 = vunpack.c.l.b16 %v67
    %v795 = vunpack.c.h.b16 %v67
    %v796 = vunpack.c.l.b16 %v68
    %v797 = vunpack.c.h.b16 %v68
    %v798 = vunpack.c.l.b16 %v69
    %v799 = vunpack.c.h.b16 %v69
    %v800 = vunpack.c.l.b16 %v70
    %v801 = vunpack.c.l.b16 %v71
    %v802 = vunpack.c.h.b16 %v71
    %v803 = vunpack.c.l.b16 %v72
    %v804 = vunpack.c.h.b16 %v72
    %v805 = vunpack.c.l.b16 %v73
    %v806 = vunpack.c.h.b16 %v73
    %v807 = vunpack.c.l.b16 %v74
    %v808 = vunpack.c.h.b16 %v74
    %v809 = vunpack.c.l.b16 %v75
    %v810 = vunpack.c.l.b16 %v76
    %v811 = vunpack.c.h.b16 %v76
    %v812 = vunpack.c.l.b16 %v77
    %v813 = vunpack.c.h.b16 %v77
    %v814 = vunpack.c.l.b16 %v78
    %v815 = vunpack.c.h.b16 %v78
    %v816 = vunpack.c.l.b16 %v79
    %v817 = vunpack.c.h.b16 %v79
    %v818 = vunpack.c.l.b16 %v80
    %v819 = vunpack.c.l.b16 %v81
    %v820 = vunpack.c.h.b16 %v81
    %v821 = vunpack.c.l.b16 %v82
    %v822 = vunpack.c.h.b16 %v82
    %v823 = vunpack.c.l.b16 %v83
    %v824 = vunpack.c.h.b16 %v83
    %v825 = vunpack.c.l.b16 %v84
    %v826 = vunpack.c.h.b16 %v84
    %v827 = vunpack.c.l.b16 %v85
    %v828 = vunpack.c.l.b16 %v86
    %v829 = vunpack.c.h.b16 %v86
    %v830 = vunpack.c.l.b16 %v87
    %v831 = vunpack.c.h.b16 %v87
    %v832 = vunpack.c.l.b16 %v88
    %v833 = vunpack.c.h.b16 %v88
    %v834 = vunpack.c.l.b16 %v89
    %v835 = vunpack.c.h.b16 %v89
    %v836 = vunpack.c.l.b16 %v90
    %v837 = vunpack.c.l.b16 %v91
    %v838 = vunpack.c.h.b16 %v91
    %v839 = vunpack.c.l.b16 %v92
    %v840 = vunpack.c.h.b16 %v92
    %v841 = vunpack.c.l.b16 %v93
    %v842 = vunpack.c.h.b16 %v93
    %v843 = vunpack.c.l.b16 %v94
    %v844 = vunpack.c.h.b16 %v94
    %v845 = vunpack.c.l.b16 %v95
    %v846 = vunpack.c.l.b16 %v96
    %v847 = vunpack.c.h.b16 %v96
    %v848 = vunpack.c.l.b16 %v97
    %v849 = vunpack.c.h.b16 %v97
    %v850 = vunpack.c.l.b16 %v98
    %v851 = vunpack.c.h.b16 %v98
    %v852 = vunpack.c.l.b16 %v99
    %v853 = vunpack.c.h.b16 %v99
    %v854 = vunpack.c.l.b16 %v100
    %v855 = vunpack.c.l.b16 %v101
    %v856 = vunpack.c.h.b16 %v101
    %v857 = vunpack.c.l.b16 %v102
    %v858 = vunpack.c.h.b16 %v102
    %v859 = vunpack.c.l.b16 %v103
    %v860 = vunpack.c.h.b16 %v103
    %v861 = vunpack.c.l.b16 %v104
    %v862 = vunpack.c.h.b16 %v104
    %v863 = vunpack.c.l.b16 %v105
    %v864 = vunpack.c.l.b16 %v106
    %v865 = vunpack.c.h.b16 %v106
    %v866 = vunpack.c.l.b16 %v107
    %v867 = vunpack.c.h.b16 %v107
    %v868 = vunpack.c.l.b16 %v108
    %v869 = vunpack.c.h.b16 %v108
    %v870 = vunpack.c.l.b16 %v109
    %v871 = vunpack.c.h.b16 %v109
    %v872 = vunpack.c.l.b16 %v110
    %v873 = vunpack.c.l.b16 %v111
    %v874 = vunpack.c.h.b16 %v111
    %v875 = vunpack.c.l.b16 %v112
    %v876 = vunpack.c.h.b16 %v112
    %v877 = vunpack.c.l.b16 %v113
    %v878 = vunpack.c.h.b16 %v113
    %v879 = vunpack.c.l.b16 %v114
    %v880 = vunpack.c.h.b16 %v114
    %v881 = vunpack.c.l.b16 %v115
    %v882 = vunpack.c.l.b16 %v116
    %v883 = vunpack.c.h.b16 %v116
    %v884 = vunpack.c.l.b16 %v117
    %v885 = vunpack.c.h.b16 %v117
    %v886 = vunpack.c.l.b16 %v118
    %v887 = vunpack.c.h.b16 %v118
    %v888 = vunpack.c.l.b16 %v119
    %v889 = vunpack.c.h.b16 %v119
    %v890 = vunpack.c.l.b16 %v120
    %v891 = vunpack.c.l.b16 %v121
    %v892 = vunpack.c.h.b16 %v121
    %v893 = vunpack.c.l.b16 %v122
    %v894 = vunpack.c.h.b16 %v122
    %v895 = vunpack.c.l.b16 %v123
    %v896 = vunpack.c.h.b16 %v123
    %v897 = vunpack.c.l.b16 %v124
    %v898 = vunpack.c.h.b16 %v124
    %v899 = vunpack.c.l.b16 %v125
    %v900 = vunpack.c.l.b16 %v126
    %v901 = vunpack.c.h.b16 %v126
    %v902 = vunpack.c.l.b16 %v127
    %v903 = vunpack.c.h.b16 %v127
    %v904 = vunpack.c.l.b16 %v128
    %v905 = vunpack.c.h.b16 %v128
    %v906 = vunpack.c.l.b16 %v129
    %v907 = vunpack.c.h.b16 %v129
    %v908 = vunpack.c.l.b16 %v130
    %v909 = vunpack.c.l.b16 %v131
    %v910 = vunpack.c.h.b16 %v131
    %v911 = vunpack.c.l.b16 %v132
    %v912 = vunpack.c.h.b16 %v132
    %v913 = vunpack.c.l.b16 %v133
    %v914 = vunpack.c.h.b16 %v133
    %v915 = vunpack.c.l.b16 %v134
    %v916 = vunpack.c.h.b16 %v134
    %v917 = vunpack.c.l.b16 %v135
    %v918 = vunpack.c.l.b16 %v136
    %v919 = vunpack.c.h.b16 %v136
    %v920 = vunpack.c.l.b16 %v137
    %v921 = vunpack.c.h.b16 %v137
    %v922 = vunpack.c.l.b16 %v138
    %v923 = vunpack.c.h.b16 %v138
    %v924 = vunpack.c.l.b16 %v139
    %v925 = vunpack.c.h.b16 %v139
    %v926 = vunpack.c.l.b16 %v140
    %v927 = vunpack.c.l.b16 %v141
    %v928 = vunpack.c.h.b16 %v141
    %v929 = vunpack.c.l.b16 %v142
    %v930 = vunpack.c.h.b16 %v142
    %v931 = vunpack.c.l.b16 %v143
    %v932 = vunpack.c.h.b16 %v143
    %v933 = vunpack.c.l.b16 %v144
    %v934 = vunpack.c.h.b16 %v144
    %v935 = vunpack.c.l.b16 %v145
    %v936 = vunpack.c.l.b16 %v146
    %v937 = vunpack.c.h.b16 %v146
    %v938 = vunpack.c.l.b16 %v147
    %v939 = vunpack.c.h.b16 %v147
    %v940 = vunpack.c.l.b16 %v148
    %v941 = vunpack.c.h.b16 %v148
    %v942 = vunpack.c.l.b16 %v149
    %v943 = vunpack.c.h.b16 %v149
    %v944 = vunpack.c.l.b16 %v150
    %v945 = vunpack.c.l.b16 %v151
    %v946 = vunpack.c.h.b16 %v151
    %v947 = vunpack.c.l.b16 %v152
    %v948 = vunpack.c.h.b16 %v152
    %v949 = vunpack.c.l.b16 %v153
    %v950 = vunpack.c.h.b16 %v153
    %v951 = vunpack.c.l.b16 %v154
    %v952 = vunpack.c.h.b16 %v154
    %v953 = vunpack.c.l.b16 %v155
    %v954 = vunpack.c.l.b16 %v156
    %v955 = vunpack.c.h.b16 %v156
    %v956 = vunpack.c.l.b16 %v157
    %v957 = vunpack.c.h.b16 %v157
    %v958 = vunpack.c.l.b16 %v158
    %v959 = vunpack.c.h.b16 %v158
    %v960 = vunpack.c.l.b16 %v159
    %v961 = vunpack.c.h.b16 %v159
    %v962 = vunpack.c.l.b16 %v160
    %v963 = vunpack.c.l.b16 %v161
    %v964 = vunpack.c.h.b16 %v161
    %v965 = vunpack.c.l.b16 %v162
    %v966 = vunpack.c.h.b16 %v162
    %v967 = vunpack.c.l.b16 %v163
    %v968 = vunpack.c.h.b16 %v163
    %v969 = vunpack.c.l.b16 %v164
    %v970 = vunpack.c.h.b16 %v164
    %v971 = vunpack.c.l.b16 %v165
    %v972 = vunpack.c.l.b16 %v166
    %v973 = vunpack.c.h.b16 %v166
    %v974 = vunpack.c.l.b16 %v167
    %v975 = vunpack.c.h.b16 %v167
    %v976 = vunpack.c.l.b16 %v168
    %v977 = vunpack.c.h.b16 %v168
    %v978 = vunpack.c.l.b16 %v169
    %v979 = vunpack.c.h.b16 %v169
    %v980 = vunpack.c.l.b16 %v170
    %v981 = vunpack.c.l.b16 %v171
    %v982 = vunpack.c.h.b16 %v171
    %v983 = vunpack.c.l.b16 %v172
    %v984 = vunpack.c.h.b16 %v172
    %v985 = vunpack.c.l.b16 %v173
    %v986 = vunpack.c.h.b16 %v173
    %v987 = vunpack.c.l.b16 %v174
    %v988 = vunpack.c.h.b16 %v174
    %v989 = vunpack.c.l.b16 %v175
    %v990 = vunpack.c.l.b16 %v176
    %v991 = vunpack.c.h.b16 %v176
    %v992 = vunpack.c.l.b16 %v177
    %v993 = vunpack.c.h.b16 %v177
    %v994 = vunpack.c.l.b16 %v178
    %v995 = vunpack.c.h.b16 %v178
    %v996 = vunpack.c.l.b16 %v179
    %v997 = vunpack.c.h.b16 %v179
    %v998 = vunpack.c.l.b16 %v180
    %v999 = vunpack.c.l.b16 %v181
    %v1000 = vunpack.c.h.b16 %v181
    %v1001 = vunpack.c.l.b16 %v182
    %v1002 = vunpack.c.h.b16 %v182
    %v1003 = vunpack.c.l.b16 %v183
    %v1004 = vunpack.c.h.b16 %v183
    %v1005 = vunpack.c.l.b16 %v184
    %v1006 = vunpack.c.h.b16 %v184
    %v1007 = vunpack.c.l.b16 %v185
    %v1008 = vunpack.c.l.b16 %v186
    %v1009 = vunpack.c.h.b16 %v186
    %v1010 = vunpack.c.l.b16 %v187
    %v1011 = vunpack.c.h.b16 %v187
    %v1012 = vunpack.c.l.b16 %v188
    %v1013 = vunpack.c.h.b16 %v188
    %v1014 = vunpack.c.l.b16 %v189
    %v1015 = vunpack.c.h.b16 %v189
    %v1016 = vunpack.c.l.b16 %v190
    %v1017 = vunpack.c.l.b16 %v191
    %v1018 = vunpack.c.h.b16 %v191
    %v1019 = vunpack.c.l.b16 %v192
    %v1020 = vunpack.c.h.b16 %v192
    %v1021 = vunpack.c.l.b16 %v193
    %v1022 = vunpack.c.h.b16 %v193
    %v1023 = vunpack.c.l.b16 %v194
    %v1024 = vunpack.c.h.b16 %v194
    %v1025 = vunpack.c.l.b16 %v195
    %v1026 = vunpack.c.l.b16 %v196
    %v1027 = vunpack.c.h.b16 %v196
    %v1028 = vunpack.c.l.b16 %v197
    %v1029 = vunpack.c.h.b16 %v197
    %v1030 = vunpack.c.l.b16 %v198
    %v1031 = vunpack.c.h.b16 %v198
    %v1032 = vunpack.c.l.b16 %v199
    %v1033 = vunpack.c.h.b16 %v199
    %v1034 = vunpack.c.l.b16 %v200
    %v1035 = vunpack.c.l.b16 %v201
    %v1036 = vunpack.c.h.b16 %v201
    %v1037 = vunpack.c.l.b16 %v202
    %v1038 = vunpack.c.h.b16 %v202
    %v1039 = vunpack.c.l.b16 %v203
    %v1040 = vunpack.c.h.b16 %v203
    %v1041 = vunpack.c.l.b16 %v204
    %v1042 = vunpack.c.h.b16 %v204
    %v1043 = vunpack.c.l.b16 %v205
    %v1044 = vunpack.c.l.b16 %v206
    %v1045 = vunpack.c.h.b16 %v206
    %v1046 = vunpack.c.l.b16 %v207
    %v1047 = vunpack.c.h.b16 %v207
    %v1048 = vunpack.c.l.b16 %v208
    %v1049 = vunpack.c.h.b16 %v208
    %v1050 = vunpack.c.l.b16 %v209
    %v1051 = vunpack.c.h.b16 %v209
    %v1052 = vunpack.c.l.b16 %v210
    %v1053 = vunpack.c.l.b16 %v211
    %v1054 = vunpack.c.h.b16 %v211
    %v1055 = vunpack.c.l.b16 %v212
    %v1056 = vunpack.c.h.b16 %v212
    %v1057 = vunpack.c.l.b16 %v213
    %v1058 = vunpack.c.h.b16 %v213
    %v1059 = vunpack.c.l.b16 %v214
    %v1060 = vunpack.c.h.b16 %v214
    %v1061 = vunpack.c.l.b16 %v215
    %v1062 = vunpack.c.l.b16 %v216
    %v1063 = vunpack.c.h.b16 %v216
    %v1064 = vunpack.c.l.b16 %v217
    %v1065 = vunpack.c.h.b16 %v217
    %v1066 = vunpack.c.l.b16 %v218
    %v1067 = vunpack.c.h.b16 %v218
    %v1068 = vunpack.c.l.b16 %v219
    %v1069 = vunpack.c.h.b16 %v219
    %v1070 = vunpack.c.l.b16 %v220
    %v1071 = vunpack.c.l.b16 %v221
    %v1072 = vunpack.c.h.b16 %v221
    %v1073 = vunpack.c.l.b16 %v222
    %v1074 = vunpack.c.h.b16 %v222
    %v1075 = vunpack.c.l.b16 %v223
    %v1076 = vunpack.c.h.b16 %v223
    %v1077 = vunpack.c.l.b16 %v224
    %v1078 = vunpack.c.h.b16 %v224
    %v1079 = vunpack.c.l.b16 %v225
    %v1080 = vunpack.c.l.b16 %v226
    %v1081 = vunpack.c.h.b16 %v226
    %v1082 = vunpack.c.l.b16 %v227
    %v1083 = vunpack.c.h.b16 %v227
    %v1084 = vunpack.c.l.b16 %v228
    %v1085 = vunpack.c.h.b16 %v228
    %v1086 = vunpack.c.l.b16 %v229
    %v1087 = vunpack.c.h.b16 %v229
    %v1088 = vunpack.c.l.b16 %v230
    %v1089 = vunpack.c.l.b16 %v231
    %v1090 = vunpack.c.h.b16 %v231
    %v1091 = vunpack.c.l.b16 %v232
    %v1092 = vunpack.c.h.b16 %v232
    %v1093 = vunpack.c.l.b16 %v233
    %v1094 = vunpack.c.h.b16 %v233
    %v1095 = vunpack.c.l.b16 %v234
    %v1096 = vunpack.c.h.b16 %v234
    %v1097 = vunpack.c.l.b16 %v235
    %v1098 = vunpack.c.l.b16 %v236
    %v1099 = vunpack.c.h.b16 %v236
    %v1100 = vunpack.c.l.b16 %v237
    %v1101 = vunpack.c.h.b16 %v237
    %v1102 = vunpack.c.l.b16 %v238
    %v1103 = vunpack.c.h.b16 %v238
    %v1104 = vunpack.c.l.b16 %v239
    %v1105 = vunpack.c.h.b16 %v239
    %v1106 = vunpack.c.l.b16 %v240
    %v1107 = vunpack.c.l.b16 %v241
    %v1108 = vunpack.c.h.b16 %v241
    %v1109 = vunpack.c.l.b16 %v242
    %v1110 = vunpack.c.h.b16 %v242
    %v1111 = vunpack.c.l.b16 %v243
    %v1112 = vunpack.c.h.b16 %v243
    %v1113 = vunpack.c.l.b16 %v244
    %v1114 = vunpack.c.h.b16 %v244
    %v1115 = vunpack.c.l.b16 %v245
    %v1116 = vunpack.c.l.b16 %v246
    %v1117 = vunpack.c.h.b16 %v246
    %v1118 = vunpack.c.l.b16 %v247
    %v1119 = vunpack.c.h.b16 %v247
    %v1120 = vunpack.c.l.b16 %v248
    %v1121 = vunpack.c.h.b16 %v248
    %v1122 = vunpack.c.l.b16 %v249
    %v1123 = vunpack.c.h.b16 %v249
    %v1124 = vunpack.c.l.b16 %v250
    %v1125 = vunpack.c.l.b16 %v251
    %v1126 = vunpack.c.h.b16 %v251
    %v1127 = vunpack.c.l.b16 %v252
    %v1128 = vunpack.c.h.b16 %v252
    %v1129 = vunpack.c.l.b16 %v253
    %v1130 = vunpack.c.h.b16 %v253
    %v1131 = vunpack.c.l.b16 %v254
    %v1132 = vunpack.c.h.b16 %v254
    %v1133 = vunpack.c.l.b16 %v255
    %v1134 = vunpack.c.l.b16 %v256
    %v1135 = vunpack.c.h.b16 %v256
    %v1136 = vunpack.c.l.b16 %v257
    %v1137 = vunpack.c.h.b16 %v257
    %v1138 = vunpack.c.l.b16 %v258
    %v1139 = vunpack.c.h.b16 %v258
    %v1140 = vunpack.c.l.b16 %v259
    %v1141 = vunpack.c.h.b16 %v259
    %v1142 = vunpack.c.l.b16 %v260
    %v1143 = vunpack.c.l.b16 %v261
    %v1144 = vunpack.c.h.b16 %v261
    %v1145 = vunpack.c.l.b16 %v262
    %v1146 = vunpack.c.h.b16 %v262
    %v1147 = vunpack.c.l.b16 %v263
    %v1148 = vunpack.c.h.b16 %v263
    %v1149 = vunpack.c.l.b16 %v264
    %v1150 = vunpack.c.h.b16 %v264
    %v1151 = vunpack.c.l.b16 %v265
    %v1152 = vunpack.c.l.b16 %v266
    %v1153 = vunpack.c.h.b16 %v266
    %v1154 = vunpack.c.l.b16 %v267
    %v1155 = vunpack.c.h.b16 %v267
    %v1156 = vunpack.c.l.b16 %v268
    %v1157 = vunpack.c.h.b16 %v268
    %v1158 = vunpack.c.l.b16 %v269
    %v1159 = vunpack.c.h.b16 %v269
    %v1160 = vunpack.c.l.b16 %v270
    %v1161 = vunpack.c.l.b16 %v271
    %v1162 = vunpack.c.h.b16 %v271
    %v1163 = vunpack.c.l.b16 %v272
    %v1164 = vunpack.c.h.b16 %v272
    %v1165 = vunpack.c.l.b16 %v273
    %v1166 = vunpack.c.h.b16 %v273
    %v1167 = vunpack.c.l.b16 %v274
    %v1168 = vunpack.c.h.b16 %v274
    %v1169 = vunpack.c.l.b16 %v275
    %v1170 = vunpack.c.l.b16 %v276
    %v1171 = vunpack.c.h.b16 %v276
    %v1172 = vunpack.c.l.b16 %v277
    %v1173 = vunpack.c.h.b16 %v277
    %v1174 = vunpack.c.l.b16 %v278
    %v1175 = vunpack.c.h.b16 %v278
    %v1176 = vunpack.c.l.b16 %v279
    %v1177 = vunpack.c.h.b16 %v279
    %v1178 = vunpack.c.l.b16 %v280
    %v1179 = vunpack.c.l.b16 %v281
    %v1180 = vunpack.c.h.b16 %v281
    %v1181 = vunpack.c.l.b16 %v282
    %v1182 = vunpack.c.h.b16 %v282
    %v1183 = vunpack.c.l.b16 %v283
    %v1184 = vunpack.c.h.b16 %v283
    %v1185 = vunpack.c.l.b16 %v284
    %v1186 = vunpack.c.h.b16 %v284
    %v1187 = vunpack.c.l.b16 %v285
    %v1188 = vunpack.c.l.b16 %v286
    %v1189 = vunpack.c.h.b16 %v286
    %v1190 = vunpack.c.l.b16 %v287
    %v1191 = vunpack.c.h.b16 %v287
    %v1192 = vunpack.c.l.b16 %v288
    %v1193 = vunpack.c.h.b16 %v288
    %v1194 = vunpack.c.l.b16 %v289
    %v1195 = vunpack.c.h.b16 %v289
    %v1196 = vunpack.c.l.b16 %v290
    %v1197 = vunpack.c.l.b16 %v291
    %v1198 = vunpack.c.h.b16 %v291
    %v1199 = vunpack.c.l.b16 %v292
    %v1200 = vunpack.c.h.b16 %v292
    %v1201 = vunpack.c.l.b16 %v293
    %v1202 = vunpack.c.h.b16 %v293
    %v1203 = vunpack.c.l.b16 %v294
    %v1204 = vunpack.c.h.b16 %v294
    %v1205 = vunpack.c.l.b16 %v295
    %v1206 = vunpack.c.l.b16 %v296
    %v1207 = vunpack.c.h.b16 %v296
    %v1208 = vunpack.c.l.b16 %v297
    %v1209 = vunpack.c.h.b16 %v297
    %v1210 = vunpack.c.l.b16 %v298
    %v1211 = vunpack.c.h.b16 %v298
    %v1212 = vunpack.c.l.b16 %v299
    %v1213 = vunpack.c.h.b16 %v299
    %v1214 = vunpack.c.l.b16 %v300
    %v1215 = vunpack.c.l.b16 %v301
    %v1216 = vunpack.c.h.b16 %v301
    %v1217 = vunpack.c.l.b16 %v302
    %v1218 = vunpack.c.h.b16 %v302
    %v1219 = vunpack.c.l.b16 %v303
    %v1220 = vunpack.c.h.b16 %v303
    %v1221 = vunpack.c.l.b16 %v304
    %v1222 = vunpack.c.h.b16 %v304
    %v1223 = vunpack.c.l.b16 %v305
    %v1224 = vunpack.c.l.b16 %v306
    %v1225 = vunpack.c.h.b16 %v306
    %v1226 = vunpack.c.l.b16 %v307
    %v1227 = vunpack.c.h.b16 %v307
    %v1228 = vunpack.c.l.b16 %v308
    %v1229 = vunpack.c.h.b16 %v308
    %v1230 = vunpack.c.l.b16 %v309
    %v1231 = vunpack.c.h.b16 %v309
    %v1232 = vunpack.c.l.b16 %v310
    %v1233 = vunpack.c.l.b16 %v311
    %v1234 = vunpack.c.h.b16 %v311
    %v1235 = vunpack.c.l.b16 %v312
    %v1236 = vunpack.c.h.b16 %v312
    %v1237 = vunpack.c.l.b16 %v313
    %v1238 = vunpack.c.h.b16 %v313
    %v1239 = vunpack.c.l.b16 %v314
    %v1240 = vunpack.c.h.b16 %v314
    %v1241 = vunpack.c.l.b16 %v315
    %v1242 = vunpack.c.l.b16 %v316
    %v1243 = vunpack.c.h.b16 %v316
    %v1244 = vunpack.c.l.b16 %v317
    %v1245 = vunpack.c.h.b16 %v317
    %v1246 = vunpack.c.l.b16 %v318
    %v1247 = vunpack.c.h.b16 %v318
    %v1248 = vunpack.c.l.b16 %v319
    %v1249 = vunpack.c.h.b16 %v319
    %v1250 = vunpack.c.l.b16 %v320
    %v1251 = vunpack.c.l.b16 %v321
    %v1252 = vunpack.c.h.b16 %v321
    %v1253 = vunpack.c.l.b16 %v322
    %v1254 = vunpack.c.h.b16 %v322
    %v1255 = vunpack.c.l.b16 %v323
    %v1256 = vunpack.c.h.b16 %v323
    %v1257 = vunpack.c.l.b16 %v324
    %v1258 = vunpack.c.h.b16 %v324
    %v1259 = vunpack.c.l.b16 %v325
    %v1260 = vunpack.c.l.b16 %v326
    %v1261 = vunpack.c.h.b16 %v326
    %v1262 = vunpack.c.l.b16 %v327
    %v1263 = vunpack.c.h.b16 %v327
    %v1264 = vunpack.c.l.b16 %v328
    %v1265 = vunpack.c.h.b16 %v328
    %v1266 = vunpack.c.l.b16 %v329
    %v1267 = vunpack.c.h.b16 %v329
    %v1268 = vunpack.c.l.b16 %v330
    %v1269 = vunpack.c.l.b16 %v331
    %v1270 = vunpack.c.h.b16 %v331
    %v1271 = vunpack.c.l.b16 %v332
    %v1272 = vunpack.c.h.b16 %v332
    %v1273 = vunpack.c.l.b16 %v333
    %v1274 = vunpack.c.h.b16 %v333
    %v1275 = vunpack.c.l.b16 %v334
    %v1276 = vunpack.c.h.b16 %v334
    %v1277 = vunpack.c.l.b16 %v335
    %v1278 = vunpack.c.l.b16 %v336
    %v1279 = vunpack.c.h.b16 %v336
    %v1280 = vunpack.c.l.b16 %v337
    %v1281 = vunpack.c.h.b16 %v337
    %v1282 = vunpack.c.l.b16 %v338
    %v1283 = vunpack.c.h.b16 %v338
    %v1284 = vunpack.c.l.b16 %v339
    %v1285 = vunpack.c.h.b16 %v339
    %v1286 = vunpack.c.l.b16 %v340
    %v1287 = vunpack.c.l.b16 %v341
    %v1288 = vunpack.c.h.b16 %v341
    %v1289 = vunpack.c.l.b16 %v342
    %v1290 = vunpack.c.h.b16 %v342
    %v1291 = vunpack.c.l.b16 %v343
    %v1292 = vunpack.c.h.b16 %v343
    %v1293 = vunpack.c.l.b16 %v344
    %v1294 = vunpack.c.h.b16 %v344
    %v1295 = vunpack.c.l.b16 %v345
    %v1296 = vpack.c.b16 %v729, %v720
    %v1297 = vpack.c.b16 %v730, %v721
    %v1298 = vpack.c.b16 %v731, %v722
    %v1299 = vpack.c.b16 %v732, %v723
    %v1300 = vpack.c.b16 %v733, %v724
    %v1301 = vpack.c.b16 %v734, %v725
    %v1302 = vpack.c.b16 %v735, %v726
    %v1303 = vpack.c.b16 %v736, %v727
    %v1304 = vpack.c.b16 %v737, %v728
    %v1305 = vpack.c.b16 %v747, %v738
    %v1306 = vpack.c.b16 %v748, %v739
    %v1307 = vpack.c.b16 %v749, %v740
    %v1308 = vpack.c.b16 %v750, %v741
    %v1309 = vpack.c.b16 %v751, %v742
    %v1310 = vpack.c.b16 %v752, %v743
    %v1311 = vpack.c.b16 %v753, %v744
    %v1312 = vpack.c.b16 %v754, %v745
    %v1313 = vpack.c.b16 %v755, %v746
    %v1314 = vpack.c.b16 %v765, %v756
    %v1315 = vpack.c.b16 %v766, %v757
    %v1316 = vpack.c.b16 %v767, %v758
    %v1317 = vpack.c.b16 %v768, %v759
    %v1318 = vpack.c.b16 %v769, %v760
    %v1319 = vpack.c.b16 %v770, %v761
    %v1320 = vpack.c.b16 %v771, %v762
    %v1321 = vpack.c.b16 %v772, %v763
    %v1322 = vpack.c.b16 %v773, %v764
    %v1323 = vpack.c.b16 %v783, %v774
    %v1324 = vpack.c.b16 %v784, %v775
    %v1325 = vpack.c.b16 %v785, %v776
    %v1326 = vpack.c.b16 %v786, %v777
    %v1327 = vpack.c.b16 %v787, %v778
    %v1328 = vpack.c.b16 %v788, %v779
    %v1329 = vpack.c.b16 %v789, %v780
    %v1330 = vpack.c.b16 %v790, %v781
    %v1331 = vpack.c.b16 %v791, %v782
    %v1332 = vpack.c.b16 %v801, %v792
    %v1333 = vpack.c.b16 %v802, %v793
    %v1334 = vpack.c.b16 %v803, %v794
    %v1335 = vpack.c.b16 %v804, %v795
    %v1336 = vpack.c.b16 %v805, %v796
    %v1337 = vpack.c.b16 %v806, %v797
    %v1338 = vpack.c.b16 %v807, %v798
    %v1339 = vpack.c.b16 %v808, %v799
    %v1340 = vpack.c.b16 %v809, %v800
    %v1341 = vpack.c.b16 %v819, %v810
    %v1342 = vpack.c.b16 %v820, %v811
    %v1343 = vpack.c.b16 %v821, %v812
    %v1344 = vpack.c.b16 %v822, %v813
    %v1345 = vpack.c.b16 %v823, %v814
    %v1346 = vpack.c.b16 %v824, %v815
    %v1347 = vpack.c.b16 %v825, %v816
    %v1348 = vpack.c.b16 %v826, %v817
    %v1349 = vpack.c.b16 %v827, %v818
    %v1350 = vpack.c.b16 %v837, %v828
    %v1351 = vpack.c.b16 %v838, %v829
    %v1352 = vpack.c.b16 %v839, %v830
    %v1353 = vpack.c.b16 %v840, %v831
    %v1354 = vpack.c.b16 %v841, %v832
    %v1355 = vpack.c.b16 %v842, %v833
    %v1356 = vpack.c.b16 %v843, %v834
    %v1357 = vpack.c.b16 %v844, %v835
    %v1358 = vpack.c.b16 %v845, %v836
    %v1359 = vpack.c.b16 %v855, %v846
    %v1360 = vpack.c.b16 %v856, %v847
    %v1361 = vpack.c.b16 %v857, %v848
    %v1362 = vpack.c.b16 %v858, %v849
    %v1363 = vpack.c.b16 %v859, %v850
    %v1364 = vpack.c.b16 %v860, %v851
    %v1365 = vpack.c.b16 %v861, %v852
    %v1366 = vpack.c.b16 %v862, %v853
    %v1367 = vpack.c.b16 %v863, %v854
    %v1368 = vpack.c.b16 %v873, %v864
    %v1369 = vpack.c.b16 %v874, %v865
    %v1370 = vpack.c.b16 %v875, %v866
    %v1371 = vpack.c.b16 %v876, %v867
    %v1372 = vpack.c.b16 %v877, %v868
    %v1373 = vpack.c.b16 %v878, %v869
    %v1374 = vpack.c.b16 %v879, %v870
    %v1375 = vpack.c.b16 %v880, %v871
    %v1376 = vpack.c.b16 %v881, %v872
    %v1377 = vpack.c.b16 %v891, %v882
    %v1378 = vpack.c.b16 %v892, %v883
    %v1379 = vpack.c.b16 %v893, %v884
    %v1380 = vpack.c.b16 %v894, %v885
    %v1381 = vpack.c.b16 %v895, %v886
    %v1382 = vpack.c.b16 %v896, %v887
    %v1383 = vpack.c.b16 %v897, %v888
    %v1384 = vpack.c.b16 %v898, %v889
    %v1385 = vpack.c.b16 %v899, %v890
    %v1386 = vpack.c.b16 %v909, %v900
    %v1387 = vpack.c.b16 %v910, %v901
    %v1388 = vpack.c.b16 %v911, %v902
    %v1389 = vpack.c.b16 %v912, %v903
    %v1390 = vpack.c.b16 %v913, %v904
    %v1391 = vpack.c.b16 %v914, %v905
    %v1392 = vpack.c.b16 %v915, %v906
    %v1393 = vpack.c.b16 %v916, %v907
    %v1394 = vpack.c.b16 %v917, %v908
    %v1395 = vpack.c.b16 %v927, %v918
    %v1396 = vpack.c.b16 %v928, %v919
    %v1397 = vpack.c.b16 %v929, %v920
    %v1398 = vpack.c.b16 %v930, %v921
    %v1399 = vpack.c.b16 %v931, %v922
    %v1400 = vpack.c.b16 %v932, %v923
    %v1401 = vpack.c.b16 %v933, %v924
    %v1402 = vpack.c.b16 %v934, %v925
    %v1403 = vpack.c.b16 %v935, %v926
    %v1404 = vpack.c.b16 %v945, %v936
    %v1405 = vpack.c.b16 %v946, %v937
    %v1406 = vpack.c.b16 %v947, %v938
    %v1407 = vpack.c.b16 %v948, %v939
    %v1408 = vpack.c.b16 %v949, %v940
    %v1409 = vpack.c.b16 %v950, %v941
    %v1410 = vpack.c.b16 %v951, %v942
    %v1411 = vpack.c.b16 %v952, %v943
    %v1412 = vpack.c.b16 %v953, %v944
    %v1413 = vpack.c.b16 %v963, %v954
    %v1414 = vpack.c.b16 %v964, %v955
    %v1415 = vpack.c.b16 %v965, %v956
    %v1416 = vpack.c.b16 %v966, %v957
    %v1417 = vpack.c.b16 %v967, %v958
    %v1418 = vpack.c.b16 %v968, %v959
    %v1419 = vpack.c.b16 %v969, %v960
    %v1420 = vpack.c.b16 %v970, %v961
    %v1421 = vpack.c.b16 %v971, %v962
    %v1422 = vpack.c.b16 %v981, %v972
    %v1423 = vpack.c.b16 %v982, %v973
    %v1424 = vpack.c.b16 %v983, %v974
    %v1425 = vpack.c.b16 %v984, %v975
    %v1426 = vpack.c.b16 %v985, %v976
    %v1427 = vpack.c.b16 %v986, %v977
    %v1428 = vpack.c.b16 %v987, %v978
    %v1429 = vpack.c.b16 %v988, %v979
    %v1430 = vpack.c.b16 %v989, %v980
    %v1431 = vpack.c.b16 %v999, %v990
    %v1432 = vpack.c.b16 %v1000, %v991
    %v1433 = vpack.c.b16 %v1001, %v992
    %v1434 = vpack.c.b16 %v1002, %v993
    %v1435 = vpack.c.b16 %v1003, %v994
    %v1436 = vpack.c.b16 %v1004, %v995
    %v1437 = vpack.c.b16 %v1005, %v996
    %v1438 = vpack.c.b16 %v1006, %v997
    %v1439 = vpack.c.b16 %v1007, %v998
    %v1440 = vpack.c.b16 %v1017, %v1008
    %v1441 = vpack.c.b16 %v1018, %v1009
    %v1442 = vpack.c.b16 %v1019, %v1010
    %v1443 = vpack.c.b16 %v1020, %v1011
    %v1444 = vpack.c.b16 %v1021, %v1012
    %v1445 = vpack.c.b16 %v1022, %v1013
    %v1446 = vpack.c.b16 %v1023, %v1014
    %v1447 = vpack.c.b16 %v1024, %v1015
    %v1448 = vpack.c.b16 %v1025, %v1016
    %v1449 = vpack.c.b16 %v1035, %v1026
    %v1450 = vpack.c.b16 %v1036, %v1027
    %v1451 = vpack.c.b16 %v1037, %v1028
    %v1452 = vpack.c.b16 %v1038, %v1029
    %v1453 = vpack.c.b16 %v1039, %v1030
    %v1454 = vpack.c.b16 %v1040, %v1031
    %v1455 = vpack.c.b16 %v1041, %v1032
    %v1456 = vpack.c.b16 %v1042, %v1033
    %v1457 = vpack.c.b16 %v1043, %v1034
    %v1458 = vpack.c.b16 %v1053, %v1044
    %v1459 = vpack.c.b16 %v1054, %v1045
    %v1460 = vpack.c.b16 %v1055, %v1046
    %v1461 = vpack.c.b16 %v1056, %v1047
    %v1462 = vpack.c.b16 %v1057, %v1048
    %v1463 = vpack.c.b16 %v1058, %v1049
    %v1464 = vpack.c.b16 %v1059, %v1050
    %v1465 = vpack.c.b16 %v1060, %v1051
    %v1466 = vpack.c.b16 %v1061, %v1052
    %v1467 = vpack.c.b16 %v1071, %v1062
    %v1468 = vpack.c.b16 %v1072, %v1063
    %v1469 = vpack.c.b16 %v1073, %v1064
    %v1470 = vpack.c.b16 %v1074, %v1065
    %v1471 = vpack.c.b16 %v1075, %v1066
    %v1472 = vpack.c.b16 %v1076, %v1067
    %v1473 = vpack.c.b16 %v1077, %v1068
    %v1474 = vpack.c.b16 %v1078, %v1069
    %v1475 = vpack.c.b16 %v1079, %v1070
    %v1476 = vpack.c.b16 %v1089, %v1080
    %v1477 = vpack.c.b16 %v1090, %v1081
    %v1478 = vpack.c.b16 %v1091, %v1082
    %v1479 = vpack.c.b16 %v1092, %v1083
    %v1480 = vpack.c.b16 %v1093, %v1084
    %v1481 = vpack.c.b16 %v1094, %v1085
    %v1482 = vpack.c.b16 %v1095, %v1086
    %v1483 = vpack.c.b16 %v1096, %v1087
    %v1484 = vpack.c.b16 %v1097, %v1088
    %v1485 = vpack.c.b16 %v1107, %v1098
    %v1486 = vpack.c.b16 %v1108, %v1099
    %v1487 = vpack.c.b16 %v1109, %v1100
    %v1488 = vpack.c.b16 %v1110, %v1101
    %v1489 = vpack.c.b16 %v1111, %v1102
    %v1490 = vpack.c.b16 %v1112, %v1103
    %v1491 = vpack.c.b16 %v1113, %v1104
    %v1492 = vpack.c.b16 %v1114, %v1105
    %v1493 = vpack.c.b16 %v1115, %v1106
    %v1494 = vpack.c.b16 %v1125, %v1116
    %v1495 = vpack.c.b16 %v1126, %v1117
    %v1496 = vpack.c.b16 %v1127, %v1118
    %v1497 = vpack.c.b16 %v1128, %v1119
    %v1498 = vpack.c.b16 %v1129, %v1120
    %v1499 = vpack.c.b16 %v1130, %v1121
    %v1500 = vpack.c.b16 %v1131, %v1122
    %v1501 = vpack.c.b16 %v1132, %v1123
    %v1502 = vpack.c.b16 %v1133, %v1124
    %v1503 = vpack.c.b16 %v1143, %v1134
    %v1504 = vpack.c.b16 %v1144, %v1135
    %v1505 = vpack.c.b16 %v1145, %v1136
    %v1506 = vpack.c.b16 %v1146, %v1137
    %v1507 = vpack.c.b16 %v1147, %v1138
    %v1508 = vpack.c.b16 %v1148, %v1139
    %v1509 = vpack.c.b16 %v1149, %v1140
    %v1510 = vpack.c.b16 %v1150, %v1141
    %v1511 = vpack.c.b16 %v1151, %v1142
    %v1512 = vpack.c.b16 %v1161, %v1152
    %v1513 = vpack.c.b16 %v1162, %v1153
    %v1514 = vpack.c.b16 %v1163, %v1154
    %v1515 = vpack.c.b16 %v1164, %v1155
    %v1516 = vpack.c.b16 %v1165, %v1156
    %v1517 = vpack.c.b16 %v1166, %v1157
    %v1518 = vpack.c.b16 %v1167, %v1158
    %v1519 = vpack.c.b16 %v1168, %v1159
    %v1520 = vpack.c.b16 %v1169, %v1160
    %v1521 = vpack.c.b16 %v1179, %v1170
    %v1522 = vpack.c.b16 %v1180, %v1171
    %v1523 = vpack.c.b16 %v1181, %v1172
    %v1524 = vpack.c.b16 %v1182, %v1173
    %v1525 = vpack.c.b16 %v1183, %v1174
    %v1526 = vpack.c.b16 %v1184, %v1175
    %v1527 = vpack.c.b16 %v1185, %v1176
    %v1528 = vpack.c.b16 %v1186, %v1177
    %v1529 = vpack.c.b16 %v1187, %v1178
    %v1530 = vpack.c.b16 %v1197, %v1188
    %v1531 = vpack.c.b16 %v1198, %v1189
    %v1532 = vpack.c.b16 %v1199, %v1190
    %v1533 = vpack.c.b16 %v1200, %v1191
    %v1534 = vpack.c.b16 %v1201, %v1192
    %v1535 = vpack.c.b16 %v1202, %v1193
    %v1536 = vpack.c.b16 %v1203, %v1194
    %v1537 = vpack.c.b16 %v1204, %v1195
    %v1538 = vpack.c.b16 %v1205, %v1196
    %v1539 = vpack.c.b16 %v1215, %v1206
    %v1540 = vpack.c.b16 %v1216, %v1207
    %v1541 = vpack.c.b16 %v1217, %v1208
    %v1542 = vpack.c.b16 %v1218, %v1209
    %v1543 = vpack.c.b16 %v1219, %v1210
    %v1544 = vpack.c.b16 %v1220, %v1211
    %v1545 = vpack.c.b16 %v1221, %v1212
    %v1546 = vpack.c.b16 %v1222, %v1213
    %v1547 = vpack.c.b16 %v1223, %v1214
    %v1548 = vpack.c.b16 %v1233, %v1224
    %v1549 = vpack.c.b16 %v1234, %v1225
    %v1550 = vpack.c.b16 %v1235, %v1226
    %v1551 = vpack.c.b16 %v1236, %v1227
    %v1552 = vpack.c.b16 %v1237, %v1228
    %v1553 = vpack.c.b16 %v1238, %v1229
    %v1554 = vpack.c.b16 %v1239, %v1230
    %v1555 = vpack.c.b16 %v1240, %v1231
    %v1556 = vpack.c.b16 %v1241, %v1232
    %v1557 = vpack.c.b16 %v1251, %v1242
    %v1558 = vpack.c.b16 %v1252, %v1243
    %v1559 = vpack.c.b16 %v1253, %v1244
    %v1560 = vpack.c.b16 %v1254, %v1245
    %v1561 = vpack.c.b16 %v1255, %v1246
    %v1562 = vpack.c.b16 %v1256, %v1247
    %v1563 = vpack.c.b16 %v1257, %v1248
    %v1564 = vpack.c.b16 %v1258, %v1249
    %v1565 = vpack.c.b16 %v1259, %v1250
    %v1566 = vpack.c.b16 %v1269, %v1260
    %v1567 = vpack.c.b16 %v1270, %v1261
    %v1568 = vpack.c.b16 %v1271, %v1262
    %v1569 = vpack.c.b16 %v1272, %v1263
    %v1570 = vpack.c.b16 %v1273, %v1264
    %v1571 = vpack.c.b16 %v1274, %v1265
    %v1572 = vpack.c.b16 %v1275, %v1266
    %v1573 = vpack.c.b16 %v1276, %v1267
    %v1574 = vpack.c.b16 %v1277, %v1268
    %v1575 = vpack.c.b16 %v1287, %v1278
    %v1576 = vpack.c.b16 %v1288, %v1279
    %v1577 = vpack.c.b16 %v1289, %v1280
    %v1578 = vpack.c.b16 %v1290, %v1281
    %v1579 = vpack.c.b16 %v1291, %v1282
    %v1580 = vpack.c.b16 %v1292, %v1283
    %v1581 = vpack.c.b16 %v1293, %v1284
    %v1582 = vpack.c.b16 %v1294, %v1285
    %v1583 = vpack.c.b16 %v1295, %v1286
    %1872 = vmatprep.subr.bf16.mxu0 %v1297
    %1873 = vmatpush1.bf16.msra.mxu0 %v1296
    %1874 = vmatprep.subr.bf16.mxu0 %v1306
    %1875 = vmatpush1.bf16.msra.mxu0 %v1305
    %1876 = vmatprep.subr.bf16.mxu0 %v1315
    %1877 = vmatpush1.bf16.msra.mxu0 %v1314
    %1878 = vmatprep.subr.bf16.mxu0 %v1324
    %1879 = vmatpush1.bf16.msra.mxu0 %v1323
    %1880 = vmatprep.subr.bf16.mxu0 %v1333
    %1881 = vmatpush1.bf16.msra.mxu0 %v1332
    %1882 = vmatprep.subr.bf16.mxu0 %v1342
    %1883 = vmatpush1.bf16.msra.mxu0 %v1341
    %1884 = vmatprep.subr.bf16.mxu0 %v1351
    %1885 = vmatpush1.bf16.msra.mxu0 %v1350
    %1886 = vmatprep.subr.bf16.mxu0 %v1360
    %1887 = vmatpush1.bf16.msra.mxu0 %v1359
    %1888 = vmatprep.subr.bf16.mxu0 %v1369
    %1889 = vmatpush1.bf16.msra.mxu0 %v1368
    %1890 = vmatprep.subr.bf16.mxu0 %v1378
    %1891 = vmatpush1.bf16.msra.mxu0 %v1377
    %1892 = vmatprep.subr.bf16.mxu0 %v1387
    %1893 = vmatpush1.bf16.msra.mxu0 %v1386
    %1894 = vmatprep.subr.bf16.mxu0 %v1396
    %1895 = vmatpush1.bf16.msra.mxu0 %v1395
    %1896 = vmatprep.subr.bf16.mxu0 %v1405
    %1897 = vmatpush1.bf16.msra.mxu0 %v1404
    %1898 = vmatprep.subr.bf16.mxu0 %v1414
    %1899 = vmatpush1.bf16.msra.mxu0 %v1413
    %1900 = vmatprep.subr.bf16.mxu0 %v1423
    %1901 = vmatpush1.bf16.msra.mxu0 %v1422
    %1902 = vmatprep.subr.bf16.mxu0 %v1432
    %1903 = vmatpush1.bf16.msra.mxu0 %v1431
    %1904 = vmatprep.mubr.bf16.mxu0 %v377
    %1905 = vmatmul.mubr.bf16.gmra.mrb[0].mxu0 %v376
    %v1906 = vpop.f32.mrb[0].mxu0
    %v1907 = vadd.f32 0.0, %v1906
    %v1908 = vpop.f32.mrb[0].mxu0
    %v1909 = vadd.f32 0.0, %v1908
    %v1910 = vpop.f32.mrb[0].mxu0
    %v1911 = vadd.f32 0.0, %v1910
    %v1912 = vpop.f32.mrb[0].mxu0
    %v1913 = vadd.f32 0.0, %v1912
    %1914 = vmatprep.mubr.bf16.mxu0 %v381
    %1915 = vmatmul.mubr.bf16.gmra.mrb[0].mxu0 %v380
    %v1916 = vpop.f32.mrb[0].mxu0
    %v1917 = vadd.f32 0.0, %v1916
    %v1918 = vpop.f32.mrb[0].mxu0
    %v1919 = vadd.f32 0.0, %v1918
    %v1920 = vpop.f32.mrb[0].mxu0
    %v1921 = vadd.f32 0.0, %v1920
    %v1922 = vpop.f32.mrb[0].mxu0
    %v1923 = vadd.f32 0.0, %v1922
    %1924 = vmatprep.mubr.bf16.mxu0 %v385
    %1925 = vmatmul.mubr.bf16.gmra.mrb[0].mxu0 %v384
    %v1926 = vpop.f32.mrb[0].mxu0
    %v1927 = vpop.f32.mrb[0].mxu0
    %v1928 = vpop.f32.mrb[0].mxu0
    %v1929 = vpop.f32.mrb[0].mxu0
    %1930 = vdwg.mxu0
    %1931 = vmatprep.subr.bf16.mxu0 %v1441
    %1932 = vmatpush1.bf16.msra.mxu0 %v1440
    %1933 = vmatprep.subr.bf16.mxu0 %v1450
    %1934 = vmatpush1.bf16.msra.mxu0 %v1449
    %1935 = vmatprep.subr.bf16.mxu0 %v1459
    %1936 = vmatpush1.bf16.msra.mxu0 %v1458
    %1937 = vmatprep.subr.bf16.mxu0 %v1468
    %1938 = vmatpush1.bf16.msra.mxu0 %v1467
    %1939 = vmatprep.subr.bf16.mxu0 %v1477
    %1940 = vmatpush1.bf16.msra.mxu0 %v1476
    %1941 = vmatprep.subr.bf16.mxu0 %v1486
    %1942 = vmatpush1.bf16.msra.mxu0 %v1485
    %1943 = vmatprep.subr.bf16.mxu0 %v1495
    %1944 = vmatpush1.bf16.msra.mxu0 %v1494
    %1945 = vmatprep.subr.bf16.mxu0 %v1504
    %1946 = vmatpush1.bf16.msra.mxu0 %v1503
    %1947 = vmatprep.subr.bf16.mxu0 %v1513
    %1948 = vmatpush1.bf16.msra.mxu0 %v1512
    %1949 = vmatprep.subr.bf16.mxu0 %v1522
    %1950 = vmatpush1.bf16.msra.mxu0 %v1521
    %1951 = vmatprep.subr.bf16.mxu0 %v1531
    %1952 = vmatpush1.bf16.msra.mxu0 %v1530
    %1953 = vmatprep.subr.bf16.mxu0 %v1540
    %1954 = vmatpush1.bf16.msra.mxu0 %v1539
    %1955 = vmatprep.subr.bf16.mxu0 %v1549
    %1956 = vmatpush1.bf16.msra.mxu0 %v1548
    %1957 = vmatprep.subr.bf16.mxu0 %v1558
    %1958 = vmatpush1.bf16.msra.mxu0 %v1557
    %1959 = vmatprep.subr.bf16.mxu0 %v1567
    %1960 = vmatpush1.bf16.msra.mxu0 %v1566
    %1961 = vmatprep.subr.bf16.mxu0 %v1576
    %1962 = vmatpush1.bf16.msra.mxu0 %v1575
    %1963 = vmatprep.mubr.bf16.mxu0 %v379
    %1964 = vmatmul.mubr.bf16.gmra.mrb[0].mxu0 %v378
    %v1965 = vpop.f32.mrb[0].mxu0
    %v1966 = vadd.f32 %v1907, %v1965
    %v1967 = vpop.f32.mrb[0].mxu0
    %v1968 = vadd.f32 %v1909, %v1967
    %v1969 = vpop.f32.mrb[0].mxu0
    %v1970 = vadd.f32 %v1911, %v1969
    %v1971 = vpop.f32.mrb[0].mxu0
    %v1972 = vadd.f32 %v1913, %v1971
    %1973 = vmatprep.mubr.bf16.mxu0 %v383
    %1974 = vmatmul.mubr.bf16.gmra.mrb[0].mxu0 %v382
    %v1975 = vpop.f32.mrb[0].mxu0
    %v1976 = vadd.f32 %v1917, %v1975
    %v1977 = vpop.f32.mrb[0].mxu0
    %v1978 = vadd.f32 %v1919, %v1977
    %v1979 = vpop.f32.mrb[0].mxu0
    %v1980 = vadd.f32 %v1921, %v1979
    %v1981 = vpop.f32.mrb[0].mxu0
    %v1982 = vadd.f32 %v1923, %v1981
    %1983 = vmatprep.mubr.bf16.mxu0 %v387
    %1984 = vmatmul.mubr.bf16.gmra.mrb[0].mxu0 %v386
    %v1985 = vpop.f32.mrb[0].mxu0
    %v1986 = vpop.f32.mrb[0].mxu0
    %v1987 = vpop.f32.mrb[0].mxu0
    %v1988 = vpop.f32.mrb[0].mxu0
    %1989 = vdwg.mxu0
    %1990 = vmatprep.subr.bf16.mxu0 %v1299
    %1991 = vmatpush1.bf16.msra.mxu0 %v1298
    %1992 = vmatprep.subr.bf16.mxu0 %v1308
    %1993 = vmatpush1.bf16.msra.mxu0 %v1307
    %1994 = vmatprep.subr.bf16.mxu0 %v1317
    %1995 = vmatpush1.bf16.msra.mxu0 %v1316
    %1996 = vmatprep.subr.bf16.mxu0 %v1326
    %1997 = vmatpush1.bf16.msra.mxu0 %v1325
    %1998 = vmatprep.subr.bf16.mxu0 %v1335
    %1999 = vmatpush1.bf16.msra.mxu0 %v1334
    %2000 = vmatprep.subr.bf16.mxu0 %v1344
    %2001 = vmatpush1.bf16.msra.mxu0 %v1343
    %2002 = vmatprep.subr.bf16.mxu0 %v1353
    %2003 = vmatpush1.bf16.msra.mxu0 %v1352
    %2004 = vmatprep.subr.bf16.mxu0 %v1362
    %2005 = vmatpush1.bf16.msra.mxu0 %v1361
    %2006 = vmatprep.subr.bf16.mxu0 %v1371
    %2007 = vmatpush1.bf16.msra.mxu0 %v1370
    %2008 = vmatprep.subr.bf16.mxu0 %v1380
    %2009 = vmatpush1.bf16.msra.mxu0 %v1379
    %2010 = vmatprep.subr.bf16.mxu0 %v1389
    %2011 = vmatpush1.bf16.msra.mxu0 %v1388
    %2012 = vmatprep.subr.bf16.mxu0 %v1398
    %2013 = vmatpush1.bf16.msra.mxu0 %v1397
    %2014 = vmatprep.subr.bf16.mxu0 %v1407
    %2015 = vmatpush1.bf16.msra.mxu0 %v1406
    %2016 = vmatprep.subr.bf16.mxu0 %v1416
    %2017 = vmatpush1.bf16.msra.mxu0 %v1415
    %2018 = vmatprep.subr.bf16.mxu0 %v1425
    %2019 = vmatpush1.bf16.msra.mxu0 %v1424
    %2020 = vmatprep.subr.bf16.mxu0 %v1434
    %2021 = vmatpush1.bf16.msra.mxu0 %v1433
    %2022 = vmatprep.mubr.bf16.mxu0 %v377
    %2023 = vmatmul.mubr.bf16.gmra.mrb[0].mxu0 %v376
    %v2024 = vpop.f32.mrb[0].mxu0
    %v2025 = vadd.f32 0.0, %v2024
    %v2026 = vpop.f32.mrb[0].mxu0
    %v2027 = vadd.f32 0.0, %v2026
    %v2028 = vpop.f32.mrb[0].mxu0
    %v2029 = vadd.f32 0.0, %v2028
    %v2030 = vpop.f32.mrb[0].mxu0
    %v2031 = vadd.f32 0.0, %v2030
    %2032 = vmatprep.mubr.bf16.mxu0 %v381
    %2033 = vmatmul.mubr.bf16.gmra.mrb[0].mxu0 %v380
    %v2034 = vpop.f32.mrb[0].mxu0
    %v2035 = vadd.f32 0.0, %v2034
    %v2036 = vpop.f32.mrb[0].mxu0
    %v2037 = vadd.f32 0.0, %v2036
    %v2038 = vpop.f32.mrb[0].mxu0
    %v2039 = vadd.f32 0.0, %v2038
    %v2040 = vpop.f32.mrb[0].mxu0
    %v2041 = vadd.f32 0.0, %v2040
    %2042 = vmatprep.mubr.bf16.mxu0 %v385
    %2043 = vmatmul.mubr.bf16.gmra.mrb[0].mxu0 %v384
    %v2044 = vpop.f32.mrb[0].mxu0
    %v2045 = vpop.f32.mrb[0].mxu0
    %v2046 = vpop.f32.mrb[0].mxu0
    %v2047 = vpop.f32.mrb[0].mxu0
    %2048 = vdwg.mxu0
    %2049 = vmatprep.subr.bf16.mxu0 %v1443
    %2050 = vmatpush1.bf16.msra.mxu0 %v1442
    %2051 = vmatprep.subr.bf16.mxu0 %v1452
    %2052 = vmatpush1.bf16.msra.mxu0 %v1451
    %2053 = vmatprep.subr.bf16.mxu0 %v1461
    %2054 = vmatpush1.bf16.msra.mxu0 %v1460
    %2055 = vmatprep.subr.bf16.mxu0 %v1470
    %2056 = vmatpush1.bf16.msra.mxu0 %v1469
    %2057 = vmatprep.subr.bf16.mxu0 %v1479
    %2058 = vmatpush1.bf16.msra.mxu0 %v1478
    %2059 = vmatprep.subr.bf16.mxu0 %v1488
    %2060 = vmatpush1.bf16.msra.mxu0 %v1487
    %2061 = vmatprep.subr.bf16.mxu0 %v1497
    %2062 = vmatpush1.bf16.msra.mxu0 %v1496
    %2063 = vmatprep.subr.bf16.mxu0 %v1506
    %2064 = vmatpush1.bf16.msra.mxu0 %v1505
    %2065 = vmatprep.subr.bf16.mxu0 %v1515
    %2066 = vmatpush1.bf16.msra.mxu0 %v1514
    %2067 = vmatprep.subr.bf16.mxu0 %v1524
    %2068 = vmatpush1.bf16.msra.mxu0 %v1523
    %2069 = vmatprep.subr.bf16.mxu0 %v1533
    %2070 = vmatpush1.bf16.msra.mxu0 %v1532
    %2071 = vmatprep.subr.bf16.mxu0 %v1542
    %2072 = vmatpush1.bf16.msra.mxu0 %v1541
    %2073 = vmatprep.subr.bf16.mxu0 %v1551
    %2074 = vmatpush1.bf16.msra.mxu0 %v1550
    %2075 = vmatprep.subr.bf16.mxu0 %v1560
    %2076 = vmatpush1.bf16.msra.mxu0 %v1559
    %2077 = vmatprep.subr.bf16.mxu0 %v1569
    %2078 = vmatpush1.bf16.msra.mxu0 %v1568
    %2079 = vmatprep.subr.bf16.mxu0 %v1578
    %2080 = vmatpush1.bf16.msra.mxu0 %v1577
    %2081 = vmatprep.mubr.bf16.mxu0 %v379
    %2082 = vmatmul.mubr.bf16.gmra.mrb[0].mxu0 %v378
    %v2083 = vpop.f32.mrb[0].mxu0
    %v2084 = vadd.f32 %v2025, %v2083
    %v2085 = vpop.f32.mrb[0].mxu0
    %v2086 = vadd.f32 %v2027, %v2085
    %v2087 = vpop.f32.mrb[0].mxu0
    %v2088 = vadd.f32 %v2029, %v2087
    %v2089 = vpop.f32.mrb[0].mxu0
    %v2090 = vadd.f32 %v2031, %v2089
    %2091 = vmatprep.mubr.bf16.mxu0 %v383
    %2092 = vmatmul.mubr.bf16.gmra.mrb[0].mxu0 %v382
    %v2093 = vpop.f32.mrb[0].mxu0
    %v2094 = vadd.f32 %v2035, %v2093
    %v2095 = vpop.f32.mrb[0].mxu0
    %v2096 = vadd.f32 %v2037, %v2095
    %v2097 = vpop.f32.mrb[0].mxu0
    %v2098 = vadd.f32 %v2039, %v2097
    %v2099 = vpop.f32.mrb[0].mxu0
    %v2100 = vadd.f32 %v2041, %v2099
    %2101 = vmatprep.mubr.bf16.mxu0 %v387
    %2102 = vmatmul.mubr.bf16.gmra.mrb[0].mxu0 %v386
    %v2103 = vpop.f32.mrb[0].mxu0
    %v2104 = vpop.f32.mrb[0].mxu0
    %v2105 = vpop.f32.mrb[0].mxu0
    %v2106 = vpop.f32.mrb[0].mxu0
    %2107 = vdwg.mxu0
    %2108 = vmatprep.subr.bf16.mxu0 %v1301
    %2109 = vmatpush1.bf16.msra.mxu0 %v1300
    %2110 = vmatprep.subr.bf16.mxu0 %v1310
    %2111 = vmatpush1.bf16.msra.mxu0 %v1309
    %2112 = vmatprep.subr.bf16.mxu0 %v1319
    %2113 = vmatpush1.bf16.msra.mxu0 %v1318
    %2114 = vmatprep.subr.bf16.mxu0 %v1328
    %2115 = vmatpush1.bf16.msra.mxu0 %v1327
    %2116 = vmatprep.subr.bf16.mxu0 %v1337
    %2117 = vmatpush1.bf16.msra.mxu0 %v1336
    %2118 = vmatprep.subr.bf16.mxu0 %v1346
    %2119 = vmatpush1.bf16.msra.mxu0 %v1345
    %2120 = vmatprep.subr.bf16.mxu0 %v1355
    %2121 = vmatpush1.bf16.msra.mxu0 %v1354
    %2122 = vmatprep.subr.bf16.mxu0 %v1364
    %2123 = vmatpush1.bf16.msra.mxu0 %v1363
    %2124 = vmatprep.subr.bf16.mxu0 %v1373
    %2125 = vmatpush1.bf16.msra.mxu0 %v1372
    %2126 = vmatprep.subr.bf16.mxu0 %v1382
    %2127 = vmatpush1.bf16.msra.mxu0 %v1381
    %2128 = vmatprep.subr.bf16.mxu0 %v1391
    %2129 = vmatpush1.bf16.msra.mxu0 %v1390
    %2130 = vmatprep.subr.bf16.mxu0 %v1400
    %2131 = vmatpush1.bf16.msra.mxu0 %v1399
    %2132 = vmatprep.subr.bf16.mxu0 %v1409
    %2133 = vmatpush1.bf16.msra.mxu0 %v1408
    %2134 = vmatprep.subr.bf16.mxu0 %v1418
    %2135 = vmatpush1.bf16.msra.mxu0 %v1417
    %2136 = vmatprep.subr.bf16.mxu0 %v1427
    %2137 = vmatpush1.bf16.msra.mxu0 %v1426
    %2138 = vmatprep.subr.bf16.mxu0 %v1436
    %2139 = vmatpush1.bf16.msra.mxu0 %v1435
    %2140 = vmatprep.mubr.bf16.mxu0 %v377
    %2141 = vmatmul.mubr.bf16.gmra.mrb[0].mxu0 %v376
    %v2142 = vpop.f32.mrb[0].mxu0
    %v2143 = vadd.f32 0.0, %v2142
    %v2144 = vpop.f32.mrb[0].mxu0
    %v2145 = vadd.f32 0.0, %v2144
    %v2146 = vpop.f32.mrb[0].mxu0
    %v2147 = vadd.f32 0.0, %v2146
    %v2148 = vpop.f32.mrb[0].mxu0
    %v2149 = vadd.f32 0.0, %v2148
    %2150 = vmatprep.mubr.bf16.mxu0 %v381
    %2151 = vmatmul.mubr.bf16.gmra.mrb[0].mxu0 %v380
    %v2152 = vpop.f32.mrb[0].mxu0
    %v2153 = vadd.f32 0.0, %v2152
    %v2154 = vpop.f32.mrb[0].mxu0
    %v2155 = vadd.f32 0.0, %v2154
    %v2156 = vpop.f32.mrb[0].mxu0
    %v2157 = vadd.f32 0.0, %v2156
    %v2158 = vpop.f32.mrb[0].mxu0
    %v2159 = vadd.f32 0.0, %v2158
    %2160 = vmatprep.mubr.bf16.mxu0 %v385
    %2161 = vmatmul.mubr.bf16.gmra.mrb[0].mxu0 %v384
    %v2162 = vpop.f32.mrb[0].mxu0
    %v2163 = vpop.f32.mrb[0].mxu0
    %v2164 = vadd.f32 0.0, %v2163
    %v2165 = vpop.f32.mrb[0].mxu0
    %v2166 = vpop.f32.mrb[0].mxu0
    %2167 = vdwg.mxu0
    %2168 = vmatprep.subr.bf16.mxu0 %v1445
    %2169 = vmatpush1.bf16.msra.mxu0 %v1444
    %2170 = vmatprep.subr.bf16.mxu0 %v1454
    %2171 = vmatpush1.bf16.msra.mxu0 %v1453
    %2172 = vmatprep.subr.bf16.mxu0 %v1463
    %2173 = vmatpush1.bf16.msra.mxu0 %v1462
    %2174 = vmatprep.subr.bf16.mxu0 %v1472
    %2175 = vmatpush1.bf16.msra.mxu0 %v1471
    %2176 = vmatprep.subr.bf16.mxu0 %v1481
    %2177 = vmatpush1.bf16.msra.mxu0 %v1480
    %2178 = vmatprep.subr.bf16.mxu0 %v1490
    %2179 = vmatpush1.bf16.msra.mxu0 %v1489
    %2180 = vmatprep.subr.bf16.mxu0 %v1499
    %2181 = vmatpush1.bf16.msra.mxu0 %v1498
    %2182 = vmatprep.subr.bf16.mxu0 %v1508
    %2183 = vmatpush1.bf16.msra.mxu0 %v1507
    %2184 = vmatprep.subr.bf16.mxu0 %v1517
    %2185 = vmatpush1.bf16.msra.mxu0 %v1516
    %2186 = vmatprep.subr.bf16.mxu0 %v1526
    %2187 = vmatpush1.bf16.msra.mxu0 %v1525
    %2188 = vmatprep.subr.bf16.mxu0 %v1535
    %2189 = vmatpush1.bf16.msra.mxu0 %v1534
    %2190 = vmatprep.subr.bf16.mxu0 %v1544
    %2191 = vmatpush1.bf16.msra.mxu0 %v1543
    %2192 = vmatprep.subr.bf16.mxu0 %v1553
    %2193 = vmatpush1.bf16.msra.mxu0 %v1552
    %2194 = vmatprep.subr.bf16.mxu0 %v1562
    %2195 = vmatpush1.bf16.msra.mxu0 %v1561
    %2196 = vmatprep.subr.bf16.mxu0 %v1571
    %2197 = vmatpush1.bf16.msra.mxu0 %v1570
    %2198 = vmatprep.subr.bf16.mxu0 %v1580
    %2199 = vmatpush1.bf16.msra.mxu0 %v1579
    %2200 = vmatprep.mubr.bf16.mxu0 %v379
    %2201 = vmatmul.mubr.bf16.gmra.mrb[0].mxu0 %v378
    %v2202 = vpop.f32.mrb[0].mxu0
    %v2203 = vadd.f32 %v2143, %v2202
    %v2204 = vpop.f32.mrb[0].mxu0
    %v2205 = vadd.f32 %v2145, %v2204
    %v2206 = vpop.f32.mrb[0].mxu0
    %v2207 = vadd.f32 %v2147, %v2206
    %v2208 = vpop.f32.mrb[0].mxu0
    %v2209 = vadd.f32 %v2149, %v2208
    %2210 = vmatprep.mubr.bf16.mxu0 %v383
    %2211 = vmatmul.mubr.bf16.gmra.mrb[0].mxu0 %v382
    %v2212 = vpop.f32.mrb[0].mxu0
    %v2213 = vadd.f32 %v2153, %v2212
    %v2214 = vpop.f32.mrb[0].mxu0
    %v2215 = vadd.f32 %v2155, %v2214
    %v2216 = vpop.f32.mrb[0].mxu0
    %v2217 = vadd.f32 %v2157, %v2216
    %v2218 = vpop.f32.mrb[0].mxu0
    %v2219 = vadd.f32 %v2159, %v2218
    %2220 = vmatprep.mubr.bf16.mxu0 %v387
    %2221 = vmatmul.mubr.bf16.gmra.mrb[0].mxu0 %v386
    %v2222 = vpop.f32.mrb[0].mxu0
    %v2223 = vpop.f32.mrb[0].mxu0
    %v2224 = vadd.f32 %v2164, %v2223
    %v2225 = vpop.f32.mrb[0].mxu0
    %v2226 = vpop.f32.mrb[0].mxu0
    %2227 = vdwg.mxu0
    %2228 = vmatprep.subr.bf16.mxu0 %v1303
    %2229 = vmatpush1.bf16.msra.mxu0 %v1302
    %2230 = vmatprep.subr.bf16.mxu0 %v1312
    %2231 = vmatpush1.bf16.msra.mxu0 %v1311
    %2232 = vmatprep.subr.bf16.mxu0 %v1321
    %2233 = vmatpush1.bf16.msra.mxu0 %v1320
    %2234 = vmatprep.subr.bf16.mxu0 %v1330
    %2235 = vmatpush1.bf16.msra.mxu0 %v1329
    %2236 = vmatprep.subr.bf16.mxu0 %v1339
    %2237 = vmatpush1.bf16.msra.mxu0 %v1338
    %2238 = vmatprep.subr.bf16.mxu0 %v1348
    %2239 = vmatpush1.bf16.msra.mxu0 %v1347
    %2240 = vmatprep.subr.bf16.mxu0 %v1357
    %2241 = vmatpush1.bf16.msra.mxu0 %v1356
    %2242 = vmatprep.subr.bf16.mxu0 %v1366
    %2243 = vmatpush1.bf16.msra.mxu0 %v1365
    %2244 = vmatprep.subr.bf16.mxu0 %v1375
    %2245 = vmatpush1.bf16.msra.mxu0 %v1374
    %2246 = vmatprep.subr.bf16.mxu0 %v1384
    %2247 = vmatpush1.bf16.msra.mxu0 %v1383
    %2248 = vmatprep.subr.bf16.mxu0 %v1393
    %2249 = vmatpush1.bf16.msra.mxu0 %v1392
    %2250 = vmatprep.subr.bf16.mxu0 %v1402
    %2251 = vmatpush1.bf16.msra.mxu0 %v1401
    %2252 = vmatprep.subr.bf16.mxu0 %v1411
    %2253 = vmatpush1.bf16.msra.mxu0 %v1410
    %2254 = vmatprep.subr.bf16.mxu0 %v1420
    %2255 = vmatpush1.bf16.msra.mxu0 %v1419
    %2256 = vmatprep.subr.bf16.mxu0 %v1429
    %2257 = vmatpush1.bf16.msra.mxu0 %v1428
    %2258 = vmatprep.subr.bf16.mxu0 %v1438
    %2259 = vmatpush1.bf16.msra.mxu0 %v1437
    %2260 = vmatprep.mubr.bf16.mxu0 %v377
    %2261 = vmatmul.mubr.bf16.gmra.mrb[0].mxu0 %v376
    %v2262 = vpop.f32.mrb[0].mxu0
    %v2263 = vadd.f32 0.0, %v2262
    %v2264 = vpop.f32.mrb[0].mxu0
    %v2265 = vadd.f32 0.0, %v2264
    %v2266 = vpop.f32.mrb[0].mxu0
    %v2267 = vadd.f32 0.0, %v2266
    %v2268 = vpop.f32.mrb[0].mxu0
    %v2269 = vadd.f32 0.0, %v2268
    %2270 = vmatprep.mubr.bf16.mxu0 %v381
    %2271 = vmatmul.mubr.bf16.gmra.mrb[0].mxu0 %v380
    %v2272 = vpop.f32.mrb[0].mxu0
    %v2273 = vadd.f32 0.0, %v2272
    %v2274 = vpop.f32.mrb[0].mxu0
    %v2275 = vadd.f32 0.0, %v2274
    %v2276 = vpop.f32.mrb[0].mxu0
    %v2277 = vadd.f32 0.0, %v2276
    %v2278 = vpop.f32.mrb[0].mxu0
    %v2279 = vadd.f32 0.0, %v2278
    %2280 = vmatprep.mubr.bf16.mxu0 %v385
    %2281 = vmatmul.mubr.bf16.gmra.mrb[0].mxu0 %v384
    %v2282 = vpop.f32.mrb[0].mxu0
    %v2283 = vadd.f32 0.0, %v2282
    %v2284 = vpop.f32.mrb[0].mxu0
    %v2285 = vadd.f32 0.0, %v2284
    %v2286 = vpop.f32.mrb[0].mxu0
    %v2287 = vpop.f32.mrb[0].mxu0
    %2288 = vdwg.mxu0
    %2289 = vmatprep.subr.bf16.mxu0 %v1447
    %2290 = vmatpush1.bf16.msra.mxu0 %v1446
    %2291 = vmatprep.subr.bf16.mxu0 %v1456
    %2292 = vmatpush1.bf16.msra.mxu0 %v1455
    %2293 = vmatprep.subr.bf16.mxu0 %v1465
    %2294 = vmatpush1.bf16.msra.mxu0 %v1464
    %2295 = vmatprep.subr.bf16.mxu0 %v1474
    %2296 = vmatpush1.bf16.msra.mxu0 %v1473
    %2297 = vmatprep.subr.bf16.mxu0 %v1483
    %2298 = vmatpush1.bf16.msra.mxu0 %v1482
    %2299 = vmatprep.subr.bf16.mxu0 %v1492
    %2300 = vmatpush1.bf16.msra.mxu0 %v1491
    %2301 = vmatprep.subr.bf16.mxu0 %v1501
    %2302 = vmatpush1.bf16.msra.mxu0 %v1500
    %2303 = vmatprep.subr.bf16.mxu0 %v1510
    %2304 = vmatpush1.bf16.msra.mxu0 %v1509
    %2305 = vmatprep.subr.bf16.mxu0 %v1519
    %2306 = vmatpush1.bf16.msra.mxu0 %v1518
    %2307 = vmatprep.subr.bf16.mxu0 %v1528
    %2308 = vmatpush1.bf16.msra.mxu0 %v1527
    %2309 = vmatprep.subr.bf16.mxu0 %v1537
    %2310 = vmatpush1.bf16.msra.mxu0 %v1536
    %2311 = vmatprep.subr.bf16.mxu0 %v1546
    %2312 = vmatpush1.bf16.msra.mxu0 %v1545
    %2313 = vmatprep.subr.bf16.mxu0 %v1555
    %2314 = vmatpush1.bf16.msra.mxu0 %v1554
    %2315 = vmatprep.subr.bf16.mxu0 %v1564
    %2316 = vmatpush1.bf16.msra.mxu0 %v1563
    %2317 = vmatprep.subr.bf16.mxu0 %v1573
    %2318 = vmatpush1.bf16.msra.mxu0 %v1572
    %2319 = vmatprep.subr.bf16.mxu0 %v1582
    %2320 = vmatpush1.bf16.msra.mxu0 %v1581
    %2321 = vmatprep.mubr.bf16.mxu0 %v379
    %2322 = vmatmul.mubr.bf16.gmra.mrb[0].mxu0 %v378
    %v2323 = vpop.f32.mrb[0].mxu0
    %v2324 = vadd.f32 %v2263, %v2323
    %v2325 = vpop.f32.mrb[0].mxu0
    %v2326 = vadd.f32 %v2265, %v2325
    %v2327 = vpop.f32.mrb[0].mxu0
    %v2328 = vadd.f32 %v2267, %v2327
    %v2329 = vpop.f32.mrb[0].mxu0
    %v2330 = vadd.f32 %v2269, %v2329
    %2331 = vmatprep.mubr.bf16.mxu0 %v383
    %2332 = vmatmul.mubr.bf16.gmra.mrb[0].mxu0 %v382
    %v2333 = vpop.f32.mrb[0].mxu0
    %v2334 = vadd.f32 %v2273, %v2333
    %v2335 = vpop.f32.mrb[0].mxu0
    %v2336 = vadd.f32 %v2275, %v2335
    %v2337 = vpop.f32.mrb[0].mxu0
    %v2338 = vadd.f32 %v2277, %v2337
    %v2339 = vpop.f32.mrb[0].mxu0
    %v2340 = vadd.f32 %v2279, %v2339
    %2341 = vmatprep.mubr.bf16.mxu0 %v387
    %2342 = vmatmul.mubr.bf16.gmra.mrb[0].mxu0 %v386
    %v2343 = vpop.f32.mrb[0].mxu0
    %v2344 = vadd.f32 %v2283, %v2343
    %v2345 = vpop.f32.mrb[0].mxu0
    %v2346 = vadd.f32 %v2285, %v2345
    %v2347 = vpop.f32.mrb[0].mxu0
    %v2348 = vpop.f32.mrb[0].mxu0
    %2349 = vdwg.mxu0
    %2350 = vmatprep.subr.bf16.mxu0 0
    %2351 = vmatpush1.bf16.msra.mxu0 %v1304
    %2352 = vmatprep.subr.bf16.mxu0 0
    %2353 = vmatpush1.bf16.msra.mxu0 %v1313
    %2354 = vmatprep.subr.bf16.mxu0 0
    %2355 = vmatpush1.bf16.msra.mxu0 %v1322
    %2356 = vmatprep.subr.bf16.mxu0 0
    %2357 = vmatpush1.bf16.msra.mxu0 %v1331
    %2358 = vmatprep.subr.bf16.mxu0 0
    %2359 = vmatpush1.bf16.msra.mxu0 %v1340
    %2360 = vmatprep.subr.bf16.mxu0 0
    %2361 = vmatpush1.bf16.msra.mxu0 %v1349
    %2362 = vmatprep.subr.bf16.mxu0 0
    %2363 = vmatpush1.bf16.msra.mxu0 %v1358
    %2364 = vmatprep.subr.bf16.mxu0 0
    %2365 = vmatpush1.bf16.msra.mxu0 %v1367
    %2366 = vmatprep.subr.bf16.mxu0 0
    %2367 = vmatpush1.bf16.msra.mxu0 %v1376
    %2368 = vmatprep.subr.bf16.mxu0 0
    %2369 = vmatpush1.bf16.msra.mxu0 %v1385
    %2370 = vmatprep.subr.bf16.mxu0 0
    %2371 = vmatpush1.bf16.msra.mxu0 %v1394
    %2372 = vmatprep.subr.bf16.mxu0 0
    %2373 = vmatpush1.bf16.msra.mxu0 %v1403
    %2374 = vmatprep.subr.bf16.mxu0 0
    %2375 = vmatpush1.bf16.msra.mxu0 %v1412
    %2376 = vmatprep.subr.bf16.mxu0 0
    %2377 = vmatpush1.bf16.msra.mxu0 %v1421
    %2378 = vmatprep.subr.bf16.mxu0 0
    %2379 = vmatpush1.bf16.msra.mxu0 %v1430
    %2380 = vmatprep.subr.bf16.mxu0 0
    %2381 = vmatpush1.bf16.msra.mxu0 %v1439
    %2382 = vmatprep.mubr.bf16.mxu0 %v377
    %2383 = vmatmul.mubr.bf16.gmra.mrb[0].mxu0 %v376
    %v2384 = vpop.f32.mrb[0].mxu0
    %v2385 = vadd.f32 0.0, %v2384
    %v2386 = vpop.f32.mrb[0].mxu0
    %v2387 = vpop.f32.mrb[0].mxu0
    %v2388 = vadd.f32 0.0, %v2387
    %v2389 = vpop.f32.mrb[0].mxu0
    %2390 = vmatprep.mubr.bf16.mxu0 %v381
    %2391 = vmatmul.mubr.bf16.gmra.mrb[0].mxu0 %v380
    %v2392 = vpop.f32.mrb[0].mxu0
    %v2393 = vadd.f32 0.0, %v2392
    %v2394 = vpop.f32.mrb[0].mxu0
    %v2395 = vpop.f32.mrb[0].mxu0
    %v2396 = vadd.f32 0.0, %v2395
    %v2397 = vpop.f32.mrb[0].mxu0
    %2398 = vmatprep.mubr.bf16.mxu0 %v385
    %2399 = vmatmul.mubr.bf16.gmra.mrb[0].mxu0 %v384
    %v2400 = vpop.f32.mrb[0].mxu0
    %v2401 = vadd.f32 0.0, %v2400
    %v2402 = vpop.f32.mrb[0].mxu0
    %v2403 = vpop.f32.mrb[0].mxu0
    %v2404 = vpop.f32.mrb[0].mxu0
    %2405 = vdwg.mxu0
    %2406 = vmatprep.subr.bf16.mxu0 0
    %2407 = vmatpush1.bf16.msra.mxu0 %v1448
    %2408 = vmatprep.subr.bf16.mxu0 0
    %2409 = vmatpush1.bf16.msra.mxu0 %v1457
    %2410 = vmatprep.subr.bf16.mxu0 0
    %2411 = vmatpush1.bf16.msra.mxu0 %v1466
    %2412 = vmatprep.subr.bf16.mxu0 0
    %2413 = vmatpush1.bf16.msra.mxu0 %v1475
    %2414 = vmatprep.subr.bf16.mxu0 0
    %2415 = vmatpush1.bf16.msra.mxu0 %v1484
    %2416 = vmatprep.subr.bf16.mxu0 0
    %2417 = vmatpush1.bf16.msra.mxu0 %v1493
    %2418 = vmatprep.subr.bf16.mxu0 0
    %2419 = vmatpush1.bf16.msra.mxu0 %v1502
    %2420 = vmatprep.subr.bf16.mxu0 0
    %2421 = vmatpush1.bf16.msra.mxu0 %v1511
    %2422 = vmatprep.subr.bf16.mxu0 0
    %2423 = vmatpush1.bf16.msra.mxu0 %v1520
    %2424 = vmatprep.subr.bf16.mxu0 0
    %2425 = vmatpush1.bf16.msra.mxu0 %v1529
    %2426 = vmatprep.subr.bf16.mxu0 0
    %2427 = vmatpush1.bf16.msra.mxu0 %v1538
    %2428 = vmatprep.subr.bf16.mxu0 0
    %2429 = vmatpush1.bf16.msra.mxu0 %v1547
    %2430 = vmatprep.subr.bf16.mxu0 0
    %2431 = vmatpush1.bf16.msra.mxu0 %v1556
    %2432 = vmatprep.subr.bf16.mxu0 0
    %2433 = vmatpush1.bf16.msra.mxu0 %v1565
    %2434 = vmatprep.subr.bf16.mxu0 0
    %2435 = vmatpush1.bf16.msra.mxu0 %v1574
    %2436 = vmatprep.subr.bf16.mxu0 0
    %2437 = vmatpush1.bf16.msra.mxu0 %v1583
    %2438 = vmatprep.mubr.bf16.mxu0 %v379
    %2439 = vmatmul.mubr.bf16.gmra.mrb[0].mxu0 %v378
    %v2440 = vpop.f32.mrb[0].mxu0
    %v2441 = vadd.f32 %v2385, %v2440
    %v2442 = vpop.f32.mrb[0].mxu0
    %v2443 = vpop.f32.mrb[0].mxu0
    %v2444 = vadd.f32 %v2388, %v2443
    %v2445 = vpop.f32.mrb[0].mxu0
    %2446 = vmatprep.mubr.bf16.mxu0 %v383
    %2447 = vmatmul.mubr.bf16.gmra.mrb[0].mxu0 %v382
    %v2448 = vpop.f32.mrb[0].mxu0
    %v2449 = vadd.f32 %v2393, %v2448
    %v2450 = vpop.f32.mrb[0].mxu0
    %v2451 = vpop.f32.mrb[0].mxu0
    %v2452 = vadd.f32 %v2396, %v2451
    %v2453 = vpop.f32.mrb[0].mxu0
    %2454 = vmatprep.mubr.bf16.mxu0 %v387
    %2455 = vmatmul.mubr.bf16.gmra.mrb[0].mxu0 %v386
    %v2456 = vpop.f32.mrb[0].mxu0
    %v2457 = vadd.f32 %v2401, %v2456
    %v2458 = vpop.f32.mrb[0].mxu0
    %v2459 = vpop.f32.mrb[0].mxu0
    %v2460 = vpop.f32.mrb[0].mxu0
    %2461 = vdwg.mxu0
    %vm2473 = vcmask 1046528
    %v2474 = vrot.slane %v2205, 1
    %v2475 = vrot.slane %v2209, 1
    %v2476 = vsel %vm2473, %v2474, %v2475
    %v2477 = vrot.slane %v2324, 1
    %v2478 = vrot.slane %v2328, 1
    %v2479 = vsel %vm2473, %v2477, %v2478
    %v2480 = vrot.slane 0.0, 1
    %v2481 = vsel %vm2473, %v2480, %v2480
    %v2482 = vrot.slane %v2215, 1
    %v2483 = vsel %vm2473, %v2475, %v2482
    %v2484 = vrot.slane %v2334, 1
    %v2485 = vsel %vm2473, %v2478, %v2484
    %v2486 = vrot.slane %v2219, 1
    %v2487 = vsel %vm2473, %v2482, %v2486
    %v2488 = vrot.slane %v2338, 1
    %v2489 = vsel %vm2473, %v2484, %v2488
    %v2490 = vrot.slane %v2224, 1
    %v2491 = vsel %vm2473, %v2486, %v2490
    %v2492 = vrot.slane %v2344, 1
    %v2493 = vsel %vm2473, %v2488, %v2492
    %v2503 = vadd.f32 %v1966, %v2476
    %v2504 = vadd.f32 %v1968, %v2479
    %v2505 = vadd.f32 %v2084, %v2481
    %v2506 = vadd.f32 %v2086, %v2481
    %v2507 = vadd.f32 %v2203, %v2481
    %v2508 = vadd.f32 %v1970, %v2483
    %v2509 = vadd.f32 %v1972, %v2485
    %v2510 = vadd.f32 %v2088, %v2481
    %v2511 = vadd.f32 %v2090, %v2481
    %v2512 = vadd.f32 %v2207, %v2481
    %v2513 = vadd.f32 %v1976, %v2487
    %v2514 = vadd.f32 %v1978, %v2489
    %v2515 = vadd.f32 %v2094, %v2481
    %v2516 = vadd.f32 %v2096, %v2481
    %v2517 = vadd.f32 %v2213, %v2481
    %v2518 = vadd.f32 %v1980, %v2491
    %v2519 = vadd.f32 %v1982, %v2493
    %v2520 = vadd.f32 %v2098, %v2481
    %v2521 = vadd.f32 %v2100, %v2481
    %v2522 = vadd.f32 %v2217, %v2481
    %vm2528 = vcmask 1045504
    %v2529 = vrot.slane %v2326, 2
    %v2530 = vrot.slane %v2330, 2
    %v2531 = vsel %vm2528, %v2529, %v2530
    %v2532 = vrot.slane 0.0, 2
    %v2533 = vsel %vm2528, %v2532, %v2532
    %v2534 = vrot.slane %v2336, 2
    %v2535 = vsel %vm2528, %v2530, %v2534
    %v2536 = vrot.slane %v2340, 2
    %v2537 = vsel %vm2528, %v2534, %v2536
    %v2538 = vrot.slane %v2346, 2
    %v2539 = vsel %vm2528, %v2536, %v2538
    %v2545 = vadd.f32 %v2503, %v2531
    %v2546 = vadd.f32 %v2504, %v2533
    %v2547 = vadd.f32 %v2505, %v2533
    %v2548 = vadd.f32 %v2506, %v2533
    %v2549 = vadd.f32 %v2507, %v2533
    %v2550 = vadd.f32 %v2508, %v2535
    %v2551 = vadd.f32 %v2509, %v2533
    %v2552 = vadd.f32 %v2510, %v2533
    %v2553 = vadd.f32 %v2511, %v2533
    %v2554 = vadd.f32 %v2512, %v2533
    %v2555 = vadd.f32 %v2513, %v2537
    %v2556 = vadd.f32 %v2514, %v2533
    %v2557 = vadd.f32 %v2515, %v2533
    %v2558 = vadd.f32 %v2516, %v2533
    %v2559 = vadd.f32 %v2517, %v2533
    %v2560 = vadd.f32 %v2518, %v2539
    %v2561 = vadd.f32 %v2519, %v2533
    %v2562 = vadd.f32 %v2520, %v2533
    %v2563 = vadd.f32 %v2521, %v2533
    %v2564 = vadd.f32 %v2522, %v2533
    %vm2570 = vcmask 1044480
    %v2571 = vrot.slane %v2441, 3
    %v2572 = vrot.slane %v2444, 3
    %v2573 = vsel %vm2570, %v2571, %v2572
    %v2574 = vrot.slane 0.0, 3
    %v2575 = vsel %vm2570, %v2574, %v2574
    %v2576 = vrot.slane %v2449, 3
    %v2577 = vsel %vm2570, %v2572, %v2576
    %v2578 = vrot.slane %v2452, 3
    %v2579 = vsel %vm2570, %v2576, %v2578
    %v2580 = vrot.slane %v2457, 3
    %v2581 = vsel %vm2570, %v2578, %v2580
    %v2587 = vadd.f32 %v2545, %v2573
    %v2588 = vadd.f32 %v2546, %v2575
    %v2589 = vadd.f32 %v2547, %v2575
    %v2590 = vadd.f32 %v2548, %v2575
    %v2591 = vadd.f32 %v2549, %v2575
    %v2592 = vadd.f32 %v2550, %v2577
    %v2593 = vadd.f32 %v2551, %v2575
    %v2594 = vadd.f32 %v2552, %v2575
    %v2595 = vadd.f32 %v2553, %v2575
    %v2596 = vadd.f32 %v2554, %v2575
    %v2597 = vadd.f32 %v2555, %v2579
    %v2598 = vadd.f32 %v2556, %v2575
    %v2599 = vadd.f32 %v2557, %v2575
    %v2600 = vadd.f32 %v2558, %v2575
    %v2601 = vadd.f32 %v2559, %v2575
    %v2602 = vadd.f32 %v2560, %v2581
    %v2603 = vadd.f32 %v2561, %v2575
    %v2604 = vadd.f32 %v2562, %v2575
    %v2605 = vadd.f32 %v2563, %v2575
    %v2606 = vadd.f32 %v2564, %v2575
    %v2607 = vlaneseq
    %v2608 = vshrl.u32 %v2607, 7
    %v2609 = vadd.s32 %v2608, 8
    %v2610 = vlaneseq
    %v2611 = vand.u32 %v2610, 127
    %v2612 = vadd.s32 %v2611, 128
    %v2613 = vadd.s32 %v2611, 256
    %v2614 = vadd.s32 %v2611, 384
    %v2615 = vadd.s32 %v2611, 512
    %vm2616 = vcmp.lt.s32.totalorder %v2611, 1
    %vm2617 = vcmp.lt.s32.totalorder %v2612, 1
    %vm2618 = vcmp.lt.s32.totalorder %v2613, 1
    %vm2619 = vcmp.lt.s32.totalorder %v2614, 1
    %vm2620 = vcmp.lt.s32.totalorder %v2615, 1
    %vm2621 = vcmp.lt.s32.totalorder %v2611, 26
    %vm2622 = vcmp.lt.s32.totalorder %v2612, 26
    %vm2623 = vcmp.lt.s32.totalorder %v2613, 26
    %vm2624 = vcmp.lt.s32.totalorder %v2614, 26
    %vm2625 = vcmp.lt.s32.totalorder %v2615, 26
    %vm2626 = vcmp.lt.s32.totalorder %v2611, 213
    %vm2627 = vcmp.lt.s32.totalorder %v2612, 213
    %vm2628 = vcmp.lt.s32.totalorder %v2613, 213
    %vm2629 = vcmp.lt.s32.totalorder %v2614, 213
    %vm2630 = vcmp.lt.s32.totalorder %v2615, 213
    %v2631 = vsel %vm2626, 11, 12
    %v2632 = vsel %vm2627, 11, 12
    %v2633 = vsel %vm2628, 11, 12
    %v2634 = vsel %vm2629, 11, 12
    %v2635 = vsel %vm2630, 11, 12
    %v2636 = vsel %vm2621, 10, %v2631
    %v2637 = vsel %vm2622, 10, %v2632
    %v2638 = vsel %vm2623, 10, %v2633
    %v2639 = vsel %vm2624, 10, %v2634
    %v2640 = vsel %vm2625, 10, %v2635
    %v2641 = vsel %vm2616, 9, %v2636
    %v2642 = vsel %vm2617, 9, %v2637
    %v2643 = vsel %vm2618, 9, %v2638
    %v2644 = vsel %vm2619, 9, %v2639
    %v2645 = vsel %vm2620, 9, %v2640
    %vm2646 = vcmp.lt.s32.totalorder %v2608, %v2641
    %vm2647 = vcmp.lt.s32.totalorder %v2608, %v2642
    %vm2648 = vcmp.lt.s32.totalorder %v2608, %v2643
    %vm2649 = vcmp.lt.s32.totalorder %v2608, %v2644
    %vm2650 = vcmp.lt.s32.totalorder %v2608, %v2645
    %vm2651 = vcmp.lt.s32.totalorder %v2609, %v2641
    %vm2652 = vcmp.lt.s32.totalorder %v2609, %v2642
    %vm2653 = vcmp.lt.s32.totalorder %v2609, %v2643
    %vm2654 = vcmp.lt.s32.totalorder %v2609, %v2644
    %vm2655 = vcmp.lt.s32.totalorder %v2609, %v2645
    %v2656 = vsel %vm2646, %v2587, -inf
    %v2657 = vsel %vm2647, %v2588, -inf
    %v2658 = vsel %vm2648, %v2589, -inf
    %v2659 = vsel %vm2649, %v2590, -inf
    %v2660 = vsel %vm2650, %v2591, -inf
    %v2661 = vsel %vm2651, %v2592, -inf
    %v2662 = vsel %vm2652, %v2593, -inf
    %v2663 = vsel %vm2653, %v2594, -inf
    %v2664 = vsel %vm2654, %v2595, -inf
    %v2665 = vsel %vm2655, %v2596, -inf
    %v2666 = vsel %vm2646, %v2597, -inf
    %v2667 = vsel %vm2647, %v2598, -inf
    %v2668 = vsel %vm2648, %v2599, -inf
    %v2669 = vsel %vm2649, %v2600, -inf
    %v2670 = vsel %vm2650, %v2601, -inf
    %v2671 = vsel %vm2651, %v2602, -inf
    %v2672 = vsel %vm2652, %v2603, -inf
    %v2673 = vsel %vm2653, %v2604, -inf
    %v2674 = vsel %vm2654, %v2605, -inf
    %v2675 = vsel %vm2655, %v2606, -inf
    %v2676 = vmax.f32 %v2656, %v2661
    %v2677 = vrot.slane %v2676, 4
    %v2678 = vmax.f32 %v2676, %v2677
    %v2679 = vrot.slane %v2678, 2
    %v2680 = vmax.f32 %v2678, %v2679
    %v2681 = vrot.slane %v2680, 1
    %v2682 = vmax.f32 %v2680, %v2681
    %v2683 = vmax.f32 %v2657, %v2662
    %v2684 = vrot.slane %v2683, 4
    %v2685 = vmax.f32 %v2683, %v2684
    %v2686 = vrot.slane %v2685, 2
    %v2687 = vmax.f32 %v2685, %v2686
    %v2688 = vrot.slane %v2687, 1
    %v2689 = vmax.f32 %v2687, %v2688
    %v2690 = vmax.f32 %v2658, %v2663
    %v2691 = vrot.slane %v2690, 4
    %v2692 = vmax.f32 %v2690, %v2691
    %v2693 = vrot.slane %v2692, 2
    %v2694 = vmax.f32 %v2692, %v2693
    %v2695 = vrot.slane %v2694, 1
    %v2696 = vmax.f32 %v2694, %v2695
    %v2697 = vmax.f32 %v2659, %v2664
    %v2698 = vrot.slane %v2697, 4
    %v2699 = vmax.f32 %v2697, %v2698
    %v2700 = vrot.slane %v2699, 2
    %v2701 = vmax.f32 %v2699, %v2700
    %v2702 = vrot.slane %v2701, 1
    %v2703 = vmax.f32 %v2701, %v2702
    %v2704 = vmax.f32 %v2660, %v2665
    %v2705 = vrot.slane %v2704, 4
    %v2706 = vmax.f32 %v2704, %v2705
    %v2707 = vrot.slane %v2706, 2
    %v2708 = vmax.f32 %v2706, %v2707
    %v2709 = vrot.slane %v2708, 1
    %v2710 = vmax.f32 %v2708, %v2709
    %v2711 = vmax.f32 %v2666, %v2671
    %v2712 = vrot.slane %v2711, 4
    %v2713 = vmax.f32 %v2711, %v2712
    %v2714 = vrot.slane %v2713, 2
    %v2715 = vmax.f32 %v2713, %v2714
    %v2716 = vrot.slane %v2715, 1
    %v2717 = vmax.f32 %v2715, %v2716
    %v2718 = vmax.f32 %v2667, %v2672
    %v2719 = vrot.slane %v2718, 4
    %v2720 = vmax.f32 %v2718, %v2719
    %v2721 = vrot.slane %v2720, 2
    %v2722 = vmax.f32 %v2720, %v2721
    %v2723 = vrot.slane %v2722, 1
    %v2724 = vmax.f32 %v2722, %v2723
    %v2725 = vmax.f32 %v2668, %v2673
    %v2726 = vrot.slane %v2725, 4
    %v2727 = vmax.f32 %v2725, %v2726
    %v2728 = vrot.slane %v2727, 2
    %v2729 = vmax.f32 %v2727, %v2728
    %v2730 = vrot.slane %v2729, 1
    %v2731 = vmax.f32 %v2729, %v2730
    %v2732 = vmax.f32 %v2669, %v2674
    %v2733 = vrot.slane %v2732, 4
    %v2734 = vmax.f32 %v2732, %v2733
    %v2735 = vrot.slane %v2734, 2
    %v2736 = vmax.f32 %v2734, %v2735
    %v2737 = vrot.slane %v2736, 1
    %v2738 = vmax.f32 %v2736, %v2737
    %v2739 = vmax.f32 %v2670, %v2675
    %v2740 = vrot.slane %v2739, 4
    %v2741 = vmax.f32 %v2739, %v2740
    %v2742 = vrot.slane %v2741, 2
    %v2743 = vmax.f32 %v2741, %v2742
    %v2744 = vrot.slane %v2743, 1
    %v2745 = vmax.f32 %v2743, %v2744
    %v2746 = vld [vmem:[%s2] sm:$0xff]
    %v2747 = vld [vmem:[%s2 + $0x8] sm:$0xff]
    %v2748 = vld [vmem:[%s2 + $0x10] sm:$0xf]
    %v2752 = vlaneseq
    %v2753 = vshrl.u32 %v2752, 7
    %v2754 = vsub.s32 0, %v2753
    %v2755 = vrot.slane %v2746, %v2754
    %v2756 = vlaneseq
    %v2757 = vshrl.u32 %v2756, 7
    %v2758 = vsub.s32 4, %v2757
    %v2759 = vrot.slane %v2746, %v2758
    %v2760 = vlaneseq
    %v2761 = vshrl.u32 %v2760, 7
    %v2762 = vsub.s32 0, %v2761
    %v2763 = vrot.slane %v2747, %v2762
    %v2764 = vlaneseq
    %v2765 = vshrl.u32 %v2764, 7
    %v2766 = vsub.s32 4, %v2765
    %v2767 = vrot.slane %v2747, %v2766
    %v2768 = vlaneseq
    %v2769 = vshrl.u32 %v2768, 7
    %v2770 = vsub.s32 0, %v2769
    %v2771 = vrot.slane %v2748, %v2770
    %v2777 = vlaneseq
    %v2778 = vshrl.u32 %v2777, 7
    %v2779 = vsub.s32 0, %v2778
    %v2780 = vrot.slane %v2755, %v2779
    %v2781 = vlaneseq
    %v2782 = vshrl.u32 %v2781, 7
    %v2783 = vsub.s32 0, %v2782
    %v2784 = vrot.slane %v2759, %v2783
    %v2785 = vlaneseq
    %v2786 = vshrl.u32 %v2785, 7
    %v2787 = vsub.s32 0, %v2786
    %v2788 = vrot.slane %v2763, %v2787
    %v2789 = vlaneseq
    %v2790 = vshrl.u32 %v2789, 7
    %v2791 = vsub.s32 0, %v2790
    %v2792 = vrot.slane %v2767, %v2791
    %v2793 = vlaneseq
    %v2794 = vshrl.u32 %v2793, 7
    %v2795 = vsub.s32 0, %v2794
    %v2796 = vrot.slane %v2771, %v2795
    %v2797 = vadd.f32 %v2682, %v2780
    %v2798 = vadd.f32 %v2689, %v2784
    %v2799 = vadd.f32 %v2696, %v2788
    %v2800 = vadd.f32 %v2703, %v2792
    %v2801 = vadd.f32 %v2710, %v2796
    %v2802 = vadd.f32 %v2717, %v2780
    %v2803 = vadd.f32 %v2724, %v2784
    %v2804 = vadd.f32 %v2731, %v2788
    %v2805 = vadd.f32 %v2738, %v2792
    %v2806 = vadd.f32 %v2745, %v2796
    %v2807 = vmax.f32 %v2797, 0.0
    %v2808 = vmax.f32 %v2798, 0.0
    %v2809 = vmax.f32 %v2799, 0.0
    %v2810 = vmax.f32 %v2800, 0.0
    %v2811 = vmax.f32 %v2801, 0.0
    %v2812 = vmax.f32 %v2802, 0.0
    %v2813 = vmax.f32 %v2803, 0.0
    %v2814 = vmax.f32 %v2804, 0.0
    %v2815 = vmax.f32 %v2805, 0.0
    %v2816 = vmax.f32 %v2806, 0.0
    %v2817 = vlaneseq
    %v2818 = vshrl.u32 %v2817, 7
    %v2819 = vsub.s32 2, %v2818
    %v2820 = vrot.slane %v2746, %v2819
    %v2821 = vlaneseq
    %v2822 = vshrl.u32 %v2821, 7
    %v2823 = vsub.s32 6, %v2822
    %v2824 = vrot.slane %v2746, %v2823
    %v2825 = vlaneseq
    %v2826 = vshrl.u32 %v2825, 7
    %v2827 = vsub.s32 2, %v2826
    %v2828 = vrot.slane %v2747, %v2827
    %v2829 = vlaneseq
    %v2830 = vshrl.u32 %v2829, 7
    %v2831 = vsub.s32 6, %v2830
    %v2832 = vrot.slane %v2747, %v2831
    %v2833 = vlaneseq
    %v2834 = vshrl.u32 %v2833, 7
    %v2835 = vsub.s32 2, %v2834
    %v2836 = vrot.slane %v2748, %v2835
    %v2842 = vlaneseq
    %v2843 = vshrl.u32 %v2842, 7
    %v2844 = vsub.s32 2, %v2843
    %v2845 = vrot.slane %v2820, %v2844
    %v2846 = vlaneseq
    %v2847 = vshrl.u32 %v2846, 7
    %v2848 = vsub.s32 2, %v2847
    %v2849 = vrot.slane %v2824, %v2848
    %v2850 = vlaneseq
    %v2851 = vshrl.u32 %v2850, 7
    %v2852 = vsub.s32 2, %v2851
    %v2853 = vrot.slane %v2828, %v2852
    %v2854 = vlaneseq
    %v2855 = vshrl.u32 %v2854, 7
    %v2856 = vsub.s32 2, %v2855
    %v2857 = vrot.slane %v2832, %v2856
    %v2858 = vlaneseq
    %v2859 = vshrl.u32 %v2858, 7
    %v2860 = vsub.s32 2, %v2859
    %v2861 = vrot.slane %v2836, %v2860
    %v2862 = vmul.f32 %v2807, %v2845
    %v2863 = vmul.f32 %v2808, %v2849
    %v2864 = vmul.f32 %v2809, %v2853
    %v2865 = vmul.f32 %v2810, %v2857
    %v2866 = vmul.f32 %v2811, %v2861
    %v2867 = vmul.f32 %v2812, %v2845
    %v2868 = vmul.f32 %v2813, %v2849
    %v2869 = vmul.f32 %v2814, %v2853
    %v2870 = vmul.f32 %v2815, %v2857
    %v2871 = vmul.f32 %v2816, %v2861
    %v2882 = vrot.slane %v2867, 7
    %vm2883 = vcmask 1041409
    %v2884 = vsel %vm2883, %v2882, %v2862
    %v2885 = vrot.slane %v2868, 7
    %v2886 = vsel %vm2883, %v2885, %v2863
    %v2887 = vrot.slane %v2869, 7
    %v2888 = vsel %vm2883, %v2887, %v2864
    %v2889 = vrot.slane %v2870, 7
    %v2890 = vsel %vm2883, %v2889, %v2865
    %v2891 = vrot.slane %v2871, 7
    %v2892 = vsel %vm2883, %v2891, %v2866
    %vm2898 = vcmask 1041408
    %v2899 = vsel %vm2898, %v2884, 0.0
    %v2900 = vsel %vm2898, %v2886, 0.0
    %v2901 = vadd.f32 %v2899, %v2900
    %v2902 = vsel %vm2898, %v2888, 0.0
    %v2903 = vadd.f32 %v2901, %v2902
    %v2904 = vsel %vm2898, %v2890, 0.0
    %v2905 = vadd.f32 %v2903, %v2904
    %v2906 = vsel %vm2898, %v2892, 0.0
    %v2907 = vadd.f32 %v2905, %v2906
    %2908 = vadd.xlane.f32.xlu0 %v2907
    %v2909 = vpop.xlane.xlu0 %2908
    %vm2910 = vcmp.eq.s32.totalorder %v2611, 0
    %v2911 = vsel %vm2910, %v2909, 0.0
    %v2912 = vlaneseq
    %v2913 = vshrl.u32 %v2912, 7
    %v2914 = vsub.s32 1, %v2913
    %v2915 = vrot.slane %v2746, %v2914
    %v2916 = vadd.f32 %v2915, %v2911
    %v2917 = vlaneseq
    %v2918 = vshrl.u32 %v2917, 7
    %v2919 = vsub.s32 3, %v2918
    %v2920 = vrot.slane %v2746, %v2919
    %v2921 = vlaneseq
    %v2922 = vshrl.u32 %v2921, 7
    %v2923 = vsub.s32 7, %v2922
    %v2924 = vrot.slane %v2746, %v2923
    %v2925 = vlaneseq
    %v2926 = vshrl.u32 %v2925, 7
    %v2927 = vsub.s32 3, %v2926
    %v2928 = vrot.slane %v2747, %v2927
    %v2929 = vlaneseq
    %v2930 = vshrl.u32 %v2929, 7
    %v2931 = vsub.s32 7, %v2930
    %v2932 = vrot.slane %v2747, %v2931
    %v2933 = vlaneseq
    %v2934 = vshrl.u32 %v2933, 7
    %v2935 = vsub.s32 3, %v2934
    %v2936 = vrot.slane %v2748, %v2935
    %v2942 = vlaneseq
    %v2943 = vshrl.u32 %v2942, 7
    %v2944 = vsub.s32 3, %v2943
    %v2945 = vrot.slane %v2920, %v2944
    %v2946 = vlaneseq
    %v2947 = vshrl.u32 %v2946, 7
    %v2948 = vsub.s32 3, %v2947
    %v2949 = vrot.slane %v2924, %v2948
    %v2950 = vlaneseq
    %v2951 = vshrl.u32 %v2950, 7
    %v2952 = vsub.s32 3, %v2951
    %v2953 = vrot.slane %v2928, %v2952
    %v2954 = vlaneseq
    %v2955 = vshrl.u32 %v2954, 7
    %v2956 = vsub.s32 3, %v2955
    %v2957 = vrot.slane %v2932, %v2956
    %v2958 = vlaneseq
    %v2959 = vshrl.u32 %v2958, 7
    %v2960 = vsub.s32 3, %v2959
    %v2961 = vrot.slane %v2936, %v2960
    %v2962 = vmul.f32 %v2807, %v2945
    %v2963 = vmul.f32 %v2808, %v2949
    %v2964 = vmul.f32 %v2809, %v2953
    %v2965 = vmul.f32 %v2810, %v2957
    %v2966 = vmul.f32 %v2811, %v2961
    %v2967 = vmul.f32 %v2812, %v2945
    %v2968 = vmul.f32 %v2813, %v2949
    %v2969 = vmul.f32 %v2814, %v2953
    %v2970 = vmul.f32 %v2815, %v2957
    %v2971 = vmul.f32 %v2816, %v2961
    %v2982 = vrot.slane %v2967, 7
    %v2983 = vsel %vm2883, %v2982, %v2962
    %v2984 = vrot.slane %v2968, 7
    %v2985 = vsel %vm2883, %v2984, %v2963
    %v2986 = vrot.slane %v2969, 7
    %v2987 = vsel %vm2883, %v2986, %v2964
    %v2988 = vrot.slane %v2970, 7
    %v2989 = vsel %vm2883, %v2988, %v2965
    %v2990 = vrot.slane %v2971, 7
    %v2991 = vsel %vm2883, %v2990, %v2966
    %v2997 = vsel %vm2898, %v2983, 0.0
    %v2998 = vsel %vm2898, %v2985, 0.0
    %v2999 = vadd.f32 %v2997, %v2998
    %v3000 = vsel %vm2898, %v2987, 0.0
    %v3001 = vadd.f32 %v2999, %v3000
    %v3002 = vsel %vm2898, %v2989, 0.0
    %v3003 = vadd.f32 %v3001, %v3002
    %v3004 = vsel %vm2898, %v2991, 0.0
    %v3005 = vadd.f32 %v3003, %v3004
    %3006 = vadd.xlane.f32.xlu0 %v3005
    %v3007 = vpop.xlane.xlu0 %3006
    %vm3008 = vcmp.eq.s32.totalorder %v2611, 1
    %v3009 = vsel %vm3008, %v3007, 0.0
    %v3010 = vadd.f32 %v2916, %v3009
    %v3011 = vmax.f32 %v3010, 0.0
    %3012 = vst [vmem:[#allocation2] sm:$0x3] %v3011
    // Predicated region
    $region14: #{convo_forward.1} parent=1 // pred_check
      _
    $region15: #{convo_forward.1} parent=1 // pred_check_branch
      %3014 = sbr.rel (0) target = $region17
    $region16: #{convo_forward.1} parent=1 // pred_region
      %s3016 = ssub.s32 32, 32
      %3017 = vsyncadd [#allocation3], %s3016
      %s3019 = sshll.u32 [#allocation2], 4
      %s3020 = int_to_ptr.vmem [resolvable:$true] %s3019
      %3022 = dma.vmem_to_hbm [thread:$0]  %s3020, 32, %s3, [#allocation3]
    $region17: #{convo_forward.1} parent=1 // pred_fallthru
      _
    // Predicated region
    $region18: #{convo_forward.1} parent=1 // pred_check
      _
    $region19: #{convo_forward.1} parent=1 // pred_check_branch
      %3024 = sbr.rel (0) target = $region21
    $region20: #{convo_forward.1} parent=1 // pred_region
      %3025 = dma.done [#allocation3], 32
    $region21: #{convo_forward.1} parent=1 // pred_fallthru
      _
    %3026 = vsyncpa [#allocation3], 1

</llo_original>
